<compile_context>
chip_gen: v7x
topology: tpu7x:2x2x1
jax: 0.10.0
libtpu: 0.0.40
codegen_flags: <defaults>
</compile_context>

<pallas_src>
import functools
import math

import jax
import jax.numpy as jnp
from jax.experimental import pallas as pl
from jax.experimental.pallas import tpu as pltpu

_LANE = 128


def ppm_kernel(groups, probe_cts,
               attcs_dx_ref, fl_unit_ref,   # SMEM: (E,), (L,)
               xp_ref, sa_ref,              # VMEM: (E, N, TM), (L, N, TM)
               out1_ref, out2_ref):         # VMEM: (L, TM), (1, TM)
    E, N, TM = xp_ref.shape

    def load_xp(e):
        return xp_ref[e].astype(jnp.float32)                        # (N, TM)

    # lac * dx summed over elements: unrolled, lane-dense VPU FMA (E is small).
    lac_dx = attcs_dx_ref[0] * load_xp(0)
    for e in range(1, E):
        lac_dx = lac_dx + attcs_dx_ref[e] * load_xp(e)              # (N, TM)

    # Inclusive prefix sum along the beam (sublane) axis: Hillis–Steele with
    # log2(N) shift-down-and-add steps (zero fill), then one more shift for the
    # exclusive sum.  N is small, so this replaces the tri-matrix matmul.
    inc = lac_dx
    d = 1
    while d < N:
        shifted = jnp.concatenate(
            [jnp.zeros((d, TM), jnp.float32), inc[:N - d, :]], axis=0)
        inc = inc + shifted
        d *= 2
    if N > 1:
        att_excl = jnp.concatenate(
            [jnp.zeros((1, TM), jnp.float32), inc[:N - 1, :]], axis=0)  # (N, TM)
    else:
        att_excl = jnp.zeros_like(inc)
    att_total = inc[N - 1:N, :]                                      # (1, TM)

    probe_after = probe_cts * jnp.exp(-att_excl)                     # (N, TM)

    # Per element: form probe_after * xp[e] once, emit that element's lines,
    # then let it die.  Beam reduction = (1,N)@(N,TM) matvec on the idle MXU;
    # fl_unit is applied after the reduction (scalar * (1, TM)).
    ones_n = jnp.ones((1, N), jnp.float32)
    line = 0
    for e in range(E):
        pa = probe_after * load_xp(e)                                # (N, TM)
        for _ in range(groups[e]):
            sig = pa * sa_ref[line].astype(jnp.float32)              # (N, TM)
            red = jnp.dot(ones_n, sig,
                          preferred_element_type=jnp.float32)        # (1, TM)
            out1_ref[line:line + 1, :] = fl_unit_ref[line] * red     # lane-dense row
            line += 1

    out2_ref[...] = probe_cts * jnp.exp(-att_total)                  # (1, TM)


def _vmem_budget_bytes():
    """Per-generation VMEM budget (v7x has only 64 MiB physical)."""
    try:
        cap = int(pltpu.get_tpu_info().vmem_capacity_bytes)
        return min((cap * 3) // 4, 100 * 1024 * 1024)
    except Exception:
        return 48 * 1024 * 1024   # conservative: fits v7x, v6e, v5e


def _choose_block_mb(mb_padded, N, E, L, in_itemsize, budget):
    """Largest lane-multiple tile that fits the VMEM budget; prefer >=2 steps."""
    def vmem_usage(tm):
        io = 2 * (E + L) * N * tm * in_itemsize    # double-buffered input tiles
        out = 2 * (L + 1) * tm * 4                 # double-buffered output tiles
        tmp = 8 * N * tm * 4                       # live f32 temporaries
        return io + out + tmp

    if mb_padded <= _LANE or mb_padded % _LANE != 0:
        return mb_padded
    cands = [c for c in (1024, 512, 256, _LANE)
             if mb_padded % c == 0 and vmem_usage(c) <= budget]
    if not cands:
        return _LANE
    multi_step = [c for c in cands if mb_padded // c >= 2]  # keep both v7x TCs busy
    return (multi_step or cands)[0]


def ppm_forward(xp, probe_attCS, detected_fl_unit_concentration,
                n_line_group_each_element, SA_theta,
                sample_size_cm, probe_cts,
                block_mb=None, carry_bf16=False):
    """Builds host-side constants / layout and calls the Pallas kernel."""
    E, MB, N = xp.shape
    groups = tuple(int(g) for g in n_line_group_each_element)
    L = sum(groups)
    assert SA_theta.shape == (L, MB * N)

    in_dtype = jnp.bfloat16 if carry_bf16 else jnp.float32
    in_itemsize = jnp.dtype(in_dtype).itemsize

    # Host-side constants: dx folded into the attenuation cross sections.
    dx = float(sample_size_cm) / N
    attcs_dx = (jnp.asarray(probe_attCS, jnp.float32) * dx).reshape(E)
    fl_unit = jnp.asarray(detected_fl_unit_concentration, jnp.float32).reshape(L)

    # Minibatch on lanes: (E, N, MB) and (L, N, MB).  Pad MB to a lane multiple
    # when it is large enough to tile (padded columns are zero -> out1 cols 0,
    # out2 cols probe_cts; both sliced away below).
    xp_t = jnp.transpose(xp.astype(in_dtype), (0, 2, 1))
    sa_t = jnp.transpose(
        jnp.asarray(SA_theta, in_dtype).reshape(L, MB, N), (0, 2, 1))
    if MB > _LANE and MB % _LANE != 0:
        mbp = ((MB + _LANE - 1) // _LANE) * _LANE
        pad = mbp - MB
        xp_t = jnp.pad(xp_t, ((0, 0), (0, 0), (0, pad)))
        sa_t = jnp.pad(sa_t, ((0, 0), (0, 0), (0, pad)))
    else:
        mbp = MB

    budget = _vmem_budget_bytes()
    if block_mb is not None:
        tm = int(block_mb)
        assert mbp % tm == 0 and (tm == mbp or tm % _LANE == 0)
    else:
        tm = _choose_block_mb(mbp, N, E, L, in_itemsize, budget)
    grid = (mbp // tm,)

    lg2 = max(1, math.ceil(math.log2(max(N, 2))))
    cost = pl.CostEstimate(
        flops=int(MB * N * (3 * E + 4 * L + 2 * lg2 + 4)),
        transcendentals=int(MB * (N + 1)),
        bytes_accessed=int(in_itemsize * (E + L) * MB * N
                           + 4 * ((L + 2) * MB + E + L)),
    )

    out1, out2 = pl.pallas_call(
        functools.partial(ppm_kernel, groups, float(probe_cts)),
        grid=grid,
        in_specs=[
            pl.BlockSpec(memory_space=pltpu.SMEM),               # attcs*dx  (E,)
            pl.BlockSpec(memory_space=pltpu.SMEM),               # fl_unit   (L,)
            pl.BlockSpec((E, N, tm), lambda i: (0, 0, i)),       # xp tile
            pl.BlockSpec((L, N, tm), lambda i: (0, 0, i)),       # SA_theta tile
        ],
        out_specs=[
            pl.BlockSpec((L, tm), lambda i: (0, i)),             # out1 (L, MBp)
            pl.BlockSpec((1, tm), lambda i: (0, i)),             # out2 (1, MBp)
        ],
        out_shape=[
            jax.ShapeDtypeStruct((L, mbp), jnp.float32),
            jax.ShapeDtypeStruct((1, mbp), jnp.float32),
        ],
        compiler_params=pltpu.CompilerParams(
            dimension_semantics=("parallel",),
            vmem_limit_bytes=int(budget)),
        cost_estimate=cost,
    )(attcs_dx, fl_unit, xp_t, sa_t)

    # Already in module convention: out1 (L, MB), out2 (MB,).
    return out1[:, :MB], out2[0, :MB]


def ppm_reference(xp, probe_attCS, detected_fl_unit_concentration,
                  n_line_group_each_element, SA_theta,
                  sample_size_cm, probe_cts):
    """Pure-JAX transcription of the PyTorch forward (for validation)."""
    E, MB, N = xp.shape
    dx = sample_size_cm / N
    att_acc = jnp.zeros((MB, N + 1), jnp.float32)
    fl_rows = []
    line = 0
    for j in range(E):
        lac = xp[j] * probe_attCS[j]
        lac_acc = jnp.concatenate(
            [jnp.zeros((MB, 1), jnp.float32), jnp.cumsum(lac, axis=1)], axis=1)
        att_acc = att_acc + lac_acc * dx
        for _ in range(int(n_line_group_each_element[j])):
            fl_rows.append(xp[j].reshape(-1) * detected_fl_unit_concentration[line])
            line += 1
    fl_map_tot = jnp.stack(fl_rows)                              # (L, MB*N)
    atten_flat = jnp.exp(-att_acc[:, :-1]).reshape(-1)
    transmission = jnp.exp(-att_acc[:, -1])
    probe_after = probe_cts * atten_flat
    sig = probe_after[None, :] * fl_map_tot * SA_theta
    out1 = jnp.sum(sig.reshape(-1, MB, N), axis=-1)
    out2 = probe_cts * transmission
    return out1, out2


if __name__ == "__main__":
    def run_case(minibatch_size, block_mb=None):
        n_element = 4                              # elements in this_aN_dic
        sample_size_n = 16
        n_line_group_each_element = [2, 1, 3, 2]   # K/L/M groups per element
        n_lines = sum(n_line_group_each_element)   # 8
        n_voxel_minibatch = minibatch_size * sample_size_n
        sample_size_cm = 0.01
        probe_cts = 1.0e5

        key = jax.random.PRNGKey(0)
        k1, k2, k3, k4 = jax.random.split(key, 4)
        xp = jax.random.uniform(k1, (n_element, minibatch_size, sample_size_n),
                                jnp.float32, 0.0, 1.0)
        probe_attCS = jax.random.uniform(k2, (n_element,), jnp.float32, 0.5, 5.0)
        detected_fl_unit_concentration = jax.random.uniform(
            k3, (n_lines,), jnp.float32, 0.1, 2.0)
        SA_theta = jax.random.uniform(k4, (n_lines, n_voxel_minibatch),
                                      jnp.float32, 0.2, 1.0)

        out1, out2 = ppm_forward(xp, probe_attCS, detected_fl_unit_concentration,
                                 n_line_group_each_element, SA_theta,
                                 sample_size_cm, probe_cts, block_mb=block_mb)
        jax.block_until_ready((out1, out2))

        ref1, ref2 = ppm_reference(xp, probe_attCS, detected_fl_unit_concentration,
                                   n_line_group_each_element, SA_theta,
                                   sample_size_cm, probe_cts)
        assert out1.shape == (n_lines, minibatch_size)
        assert out2.shape == (minibatch_size,)
        assert jnp.allclose(out1, ref1, rtol=1e-4, atol=1e-2)
        assert jnp.allclose(out2, ref2, rtol=1e-4, atol=1e-2)

    # Lane-dense tiled case: MB=256 -> tm=128, grid=(2,) (keeps both v7x TCs busy).
    run_case(256)
    # Small, untiled case: MB=40 -> tm=40 (full block), grid=(1,).
    run_case(40)

    print("KERNEL_OK")
</pallas_src>

<mosaic_0001>
module attributes {stable_mosaic.version = 11 : i64} {
  func.func @ppm_kernel(%arg0: i32, %arg1: memref<4xf32, #tpu.memory_space<smem>>, %arg2: memref<8xf32, #tpu.memory_space<smem>>, %arg3: memref<4x16x128xf32, #tpu.memory_space<vmem>>, %arg4: memref<8x16x128xf32, #tpu.memory_space<vmem>>, %arg5: memref<8x128xf32, #tpu.memory_space<vmem>>, %arg6: memref<1x128xf32, #tpu.memory_space<vmem>>) attributes {dimension_semantics = [#tpu.dimension_semantics<parallel>], iteration_bounds = array<i64: 2>, scalar_prefetch = 0 : i64, scratch_operands = 0 : i64, tpu.core_type = #tpu.core_type<tc>, window_params = [{transform_indices = @transform_0, window_bounds = array<i64: 4>}, {transform_indices = @transform_1, window_bounds = array<i64: 8>}, {transform_indices = @transform_2, window_bounds = array<i64: 4, 16, 128>}, {transform_indices = @transform_3, window_bounds = array<i64: 8, 16, 128>}, {transform_indices = @transform_4, window_bounds = array<i64: 8, 128>}, {transform_indices = @transform_5, window_bounds = array<i64: 1, 128>}]} {
    %c0 = arith.constant 0 : index
    %0 = memref.load %arg1[%c0] : memref<4xf32, #tpu.memory_space<smem>>
    %c0_0 = arith.constant 0 : index
    %c0_1 = arith.constant 0 : index
    %c0_2 = arith.constant 0 : index
    %1 = vector.load %arg3[%c0_0, %c0_1, %c0_2] : memref<4x16x128xf32, #tpu.memory_space<vmem>>, vector<1x16x128xf32>
    %2 = vector.shape_cast %1 : vector<1x16x128xf32> to vector<16x128xf32>
    %3 = vector.broadcast %0 : f32 to vector<16x128xf32>
    %4 = arith.mulf %3, %2 : vector<16x128xf32>
    %c1 = arith.constant 1 : index
    %5 = memref.load %arg1[%c1] : memref<4xf32, #tpu.memory_space<smem>>
    %c1_3 = arith.constant 1 : index
    %c0_4 = arith.constant 0 : index
    %c0_5 = arith.constant 0 : index
    %6 = vector.load %arg3[%c1_3, %c0_4, %c0_5] : memref<4x16x128xf32, #tpu.memory_space<vmem>>, vector<1x16x128xf32>
    %7 = vector.shape_cast %6 : vector<1x16x128xf32> to vector<16x128xf32>
    %8 = vector.broadcast %5 : f32 to vector<16x128xf32>
    %9 = arith.mulf %8, %7 : vector<16x128xf32>
    %10 = arith.addf %4, %9 : vector<16x128xf32>
    %c2 = arith.constant 2 : index
    %11 = memref.load %arg1[%c2] : memref<4xf32, #tpu.memory_space<smem>>
    %c2_6 = arith.constant 2 : index
    %c0_7 = arith.constant 0 : index
    %c0_8 = arith.constant 0 : index
    %12 = vector.load %arg3[%c2_6, %c0_7, %c0_8] : memref<4x16x128xf32, #tpu.memory_space<vmem>>, vector<1x16x128xf32>
    %13 = vector.shape_cast %12 : vector<1x16x128xf32> to vector<16x128xf32>
    %14 = vector.broadcast %11 : f32 to vector<16x128xf32>
    %15 = arith.mulf %14, %13 : vector<16x128xf32>
    %16 = arith.addf %10, %15 : vector<16x128xf32>
    %c3 = arith.constant 3 : index
    %17 = memref.load %arg1[%c3] : memref<4xf32, #tpu.memory_space<smem>>
    %c3_9 = arith.constant 3 : index
    %c0_10 = arith.constant 0 : index
    %c0_11 = arith.constant 0 : index
    %18 = vector.load %arg3[%c3_9, %c0_10, %c0_11] : memref<4x16x128xf32, #tpu.memory_space<vmem>>, vector<1x16x128xf32>
    %19 = vector.shape_cast %18 : vector<1x16x128xf32> to vector<16x128xf32>
    %20 = vector.broadcast %17 : f32 to vector<16x128xf32>
    %21 = arith.mulf %20, %19 : vector<16x128xf32>
    %22 = arith.addf %16, %21 : vector<16x128xf32>
    %cst = arith.constant 0.000000e+00 : f32
    %23 = vector.broadcast %cst : f32 to vector<1x128xf32>
    %24 = vector.extract_strided_slice %22 {offsets = [0, 0], sizes = [15, 128], strides = [1, 1]} : vector<16x128xf32> to vector<15x128xf32>
    %25 = tpu.concatenate %23, %24 in 0 : vector<1x128xf32>, vector<15x128xf32> -> vector<16x128xf32>
    %26 = arith.addf %22, %25 : vector<16x128xf32>
    %cst_12 = arith.constant 0.000000e+00 : f32
    %27 = vector.broadcast %cst_12 : f32 to vector<2x128xf32>
    %28 = vector.extract_strided_slice %26 {offsets = [0, 0], sizes = [14, 128], strides = [1, 1]} : vector<16x128xf32> to vector<14x128xf32>
    %29 = tpu.concatenate %27, %28 in 0 : vector<2x128xf32>, vector<14x128xf32> -> vector<16x128xf32>
    %30 = arith.addf %26, %29 : vector<16x128xf32>
    %cst_13 = arith.constant 0.000000e+00 : f32
    %31 = vector.broadcast %cst_13 : f32 to vector<4x128xf32>
    %32 = vector.extract_strided_slice %30 {offsets = [0, 0], sizes = [12, 128], strides = [1, 1]} : vector<16x128xf32> to vector<12x128xf32>
    %33 = tpu.concatenate %31, %32 in 0 : vector<4x128xf32>, vector<12x128xf32> -> vector<16x128xf32>
    %34 = arith.addf %30, %33 : vector<16x128xf32>
    %cst_14 = arith.constant 0.000000e+00 : f32
    %35 = vector.broadcast %cst_14 : f32 to vector<8x128xf32>
    %36 = vector.extract_strided_slice %34 {offsets = [0, 0], sizes = [8, 128], strides = [1, 1]} : vector<16x128xf32> to vector<8x128xf32>
    %37 = tpu.concatenate %35, %36 in 0 : vector<8x128xf32>, vector<8x128xf32> -> vector<16x128xf32>
    %38 = arith.addf %34, %37 : vector<16x128xf32>
    %cst_15 = arith.constant 0.000000e+00 : f32
    %39 = vector.broadcast %cst_15 : f32 to vector<1x128xf32>
    %40 = vector.extract_strided_slice %38 {offsets = [0, 0], sizes = [15, 128], strides = [1, 1]} : vector<16x128xf32> to vector<15x128xf32>
    %41 = tpu.concatenate %39, %40 in 0 : vector<1x128xf32>, vector<15x128xf32> -> vector<16x128xf32>
    %42 = vector.extract_strided_slice %38 {offsets = [15, 0], sizes = [1, 128], strides = [1, 1]} : vector<16x128xf32> to vector<1x128xf32>
    %cst_16 = arith.constant 0.000000e+00 : f32
    %43 = vector.broadcast %cst_16 : f32 to vector<16x128xf32>
    %44 = arith.subf %43, %41 : vector<16x128xf32>
    %45 = math.exp %44 : vector<16x128xf32>
    %cst_17 = arith.constant 1.000000e+05 : f32
    %46 = vector.broadcast %cst_17 : f32 to vector<16x128xf32>
    %47 = arith.mulf %46, %45 : vector<16x128xf32>
    %cst_18 = arith.constant 1.000000e+00 : f32
    %48 = vector.broadcast %cst_18 : f32 to vector<1x16xf32>
    %c0_19 = arith.constant 0 : index
    %c0_20 = arith.constant 0 : index
    %c0_21 = arith.constant 0 : index
    %49 = vector.load %arg3[%c0_19, %c0_20, %c0_21] : memref<4x16x128xf32, #tpu.memory_space<vmem>>, vector<1x16x128xf32>
    %50 = vector.shape_cast %49 : vector<1x16x128xf32> to vector<16x128xf32>
    %51 = arith.mulf %47, %50 : vector<16x128xf32>
    %c0_22 = arith.constant 0 : index
    %c0_23 = arith.constant 0 : index
    %c0_24 = arith.constant 0 : index
    %52 = vector.load %arg4[%c0_22, %c0_23, %c0_24] : memref<8x16x128xf32, #tpu.memory_space<vmem>>, vector<1x16x128xf32>
    %53 = vector.shape_cast %52 : vector<1x16x128xf32> to vector<16x128xf32>
    %54 = arith.mulf %51, %53 : vector<16x128xf32>
    %cst_25 = arith.constant dense<0.000000e+00> : vector<1x128xf32>
    %55 = tpu.matmul %48, %54, %cst_25 {dimension_numbers = #tpu.dot_dimension_numbers<[1], [0], [0], [1], [0, 0, 1, 1], [], []>} : vector<1x16xf32>, vector<16x128xf32>, vector<1x128xf32> -> vector<1x128xf32>
    %c0_26 = arith.constant 0 : index
    %56 = memref.load %arg2[%c0_26] : memref<8xf32, #tpu.memory_space<smem>>
    %57 = vector.broadcast %56 : f32 to vector<1x128xf32>
    %58 = arith.mulf %57, %55 : vector<1x128xf32>
    %c0_27 = arith.constant 0 : index
    %c0_28 = arith.constant 0 : index
    %59 = vector.load %arg5[%c0_27, %c0_28] : memref<8x128xf32, #tpu.memory_space<vmem>>, vector<1x128xf32>
    tpu.vector_store %arg5[%c0_27, %c0_28], %58 {strides = array<i32>} : memref<8x128xf32, #tpu.memory_space<vmem>>, vector<1x128xf32>,
    %c1_29 = arith.constant 1 : index
    %c0_30 = arith.constant 0 : index
    %c0_31 = arith.constant 0 : index
    %60 = vector.load %arg4[%c1_29, %c0_30, %c0_31] : memref<8x16x128xf32, #tpu.memory_space<vmem>>, vector<1x16x128xf32>
    %61 = vector.shape_cast %60 : vector<1x16x128xf32> to vector<16x128xf32>
    %62 = arith.mulf %51, %61 : vector<16x128xf32>
    %cst_32 = arith.constant dense<0.000000e+00> : vector<1x128xf32>
    %63 = tpu.matmul %48, %62, %cst_32 {dimension_numbers = #tpu.dot_dimension_numbers<[1], [0], [0], [1], [0, 0, 1, 1], [], []>} : vector<1x16xf32>, vector<16x128xf32>, vector<1x128xf32> -> vector<1x128xf32>
    %c1_33 = arith.constant 1 : index
    %64 = memref.load %arg2[%c1_33] : memref<8xf32, #tpu.memory_space<smem>>
    %65 = vector.broadcast %64 : f32 to vector<1x128xf32>
    %66 = arith.mulf %65, %63 : vector<1x128xf32>
    %c1_34 = arith.constant 1 : index
    %c0_35 = arith.constant 0 : index
    %67 = vector.load %arg5[%c1_34, %c0_35] : memref<8x128xf32, #tpu.memory_space<vmem>>, vector<1x128xf32>
    tpu.vector_store %arg5[%c1_34, %c0_35], %66 {strides = array<i32>} : memref<8x128xf32, #tpu.memory_space<vmem>>, vector<1x128xf32>,
    %c1_36 = arith.constant 1 : index
    %c0_37 = arith.constant 0 : index
    %c0_38 = arith.constant 0 : index
    %68 = vector.load %arg3[%c1_36, %c0_37, %c0_38] : memref<4x16x128xf32, #tpu.memory_space<vmem>>, vector<1x16x128xf32>
    %69 = vector.shape_cast %68 : vector<1x16x128xf32> to vector<16x128xf32>
    %70 = arith.mulf %47, %69 : vector<16x128xf32>
    %c2_39 = arith.constant 2 : index
    %c0_40 = arith.constant 0 : index
    %c0_41 = arith.constant 0 : index
    %71 = vector.load %arg4[%c2_39, %c0_40, %c0_41] : memref<8x16x128xf32, #tpu.memory_space<vmem>>, vector<1x16x128xf32>
    %72 = vector.shape_cast %71 : vector<1x16x128xf32> to vector<16x128xf32>
    %73 = arith.mulf %70, %72 : vector<16x128xf32>
    %cst_42 = arith.constant dense<0.000000e+00> : vector<1x128xf32>
    %74 = tpu.matmul %48, %73, %cst_42 {dimension_numbers = #tpu.dot_dimension_numbers<[1], [0], [0], [1], [0, 0, 1, 1], [], []>} : vector<1x16xf32>, vector<16x128xf32>, vector<1x128xf32> -> vector<1x128xf32>
    %c2_43 = arith.constant 2 : index
    %75 = memref.load %arg2[%c2_43] : memref<8xf32, #tpu.memory_space<smem>>
    %76 = vector.broadcast %75 : f32 to vector<1x128xf32>
    %77 = arith.mulf %76, %74 : vector<1x128xf32>
    %c2_44 = arith.constant 2 : index
    %c0_45 = arith.constant 0 : index
    %78 = vector.load %arg5[%c2_44, %c0_45] : memref<8x128xf32, #tpu.memory_space<vmem>>, vector<1x128xf32>
    tpu.vector_store %arg5[%c2_44, %c0_45], %77 {strides = array<i32>} : memref<8x128xf32, #tpu.memory_space<vmem>>, vector<1x128xf32>,
    %c2_46 = arith.constant 2 : index
    %c0_47 = arith.constant 0 : index
    %c0_48 = arith.constant 0 : index
    %79 = vector.load %arg3[%c2_46, %c0_47, %c0_48] : memref<4x16x128xf32, #tpu.memory_space<vmem>>, vector<1x16x128xf32>
    %80 = vector.shape_cast %79 : vector<1x16x128xf32> to vector<16x128xf32>
    %81 = arith.mulf %47, %80 : vector<16x128xf32>
    %c3_49 = arith.constant 3 : index
    %c0_50 = arith.constant 0 : index
    %c0_51 = arith.constant 0 : index
    %82 = vector.load %arg4[%c3_49, %c0_50, %c0_51] : memref<8x16x128xf32, #tpu.memory_space<vmem>>, vector<1x16x128xf32>
    %83 = vector.shape_cast %82 : vector<1x16x128xf32> to vector<16x128xf32>
    %84 = arith.mulf %81, %83 : vector<16x128xf32>
    %cst_52 = arith.constant dense<0.000000e+00> : vector<1x128xf32>
    %85 = tpu.matmul %48, %84, %cst_52 {dimension_numbers = #tpu.dot_dimension_numbers<[1], [0], [0], [1], [0, 0, 1, 1], [], []>} : vector<1x16xf32>, vector<16x128xf32>, vector<1x128xf32> -> vector<1x128xf32>
    %c3_53 = arith.constant 3 : index
    %86 = memref.load %arg2[%c3_53] : memref<8xf32, #tpu.memory_space<smem>>
    %87 = vector.broadcast %86 : f32 to vector<1x128xf32>
    %88 = arith.mulf %87, %85 : vector<1x128xf32>
    %c3_54 = arith.constant 3 : index
    %c0_55 = arith.constant 0 : index
    %89 = vector.load %arg5[%c3_54, %c0_55] : memref<8x128xf32, #tpu.memory_space<vmem>>, vector<1x128xf32>
    tpu.vector_store %arg5[%c3_54, %c0_55], %88 {strides = array<i32>} : memref<8x128xf32, #tpu.memory_space<vmem>>, vector<1x128xf32>,
    %c4 = arith.constant 4 : index
    %c0_56 = arith.constant 0 : index
    %c0_57 = arith.constant 0 : index
    %90 = vector.load %arg4[%c4, %c0_56, %c0_57] : memref<8x16x128xf32, #tpu.memory_space<vmem>>, vector<1x16x128xf32>
    %91 = vector.shape_cast %90 : vector<1x16x128xf32> to vector<16x128xf32>
    %92 = arith.mulf %81, %91 : vector<16x128xf32>
    %cst_58 = arith.constant dense<0.000000e+00> : vector<1x128xf32>
    %93 = tpu.matmul %48, %92, %cst_58 {dimension_numbers = #tpu.dot_dimension_numbers<[1], [0], [0], [1], [0, 0, 1, 1], [], []>} : vector<1x16xf32>, vector<16x128xf32>, vector<1x128xf32> -> vector<1x128xf32>
    %c4_59 = arith.constant 4 : index
    %94 = memref.load %arg2[%c4_59] : memref<8xf32, #tpu.memory_space<smem>>
    %95 = vector.broadcast %94 : f32 to vector<1x128xf32>
    %96 = arith.mulf %95, %93 : vector<1x128xf32>
    %c4_60 = arith.constant 4 : index
    %c0_61 = arith.constant 0 : index
    %97 = vector.load %arg5[%c4_60, %c0_61] : memref<8x128xf32, #tpu.memory_space<vmem>>, vector<1x128xf32>
    tpu.vector_store %arg5[%c4_60, %c0_61], %96 {strides = array<i32>} : memref<8x128xf32, #tpu.memory_space<vmem>>, vector<1x128xf32>,
    %c5 = arith.constant 5 : index
    %c0_62 = arith.constant 0 : index
    %c0_63 = arith.constant 0 : index
    %98 = vector.load %arg4[%c5, %c0_62, %c0_63] : memref<8x16x128xf32, #tpu.memory_space<vmem>>, vector<1x16x128xf32>
    %99 = vector.shape_cast %98 : vector<1x16x128xf32> to vector<16x128xf32>
    %100 = arith.mulf %81, %99 : vector<16x128xf32>
    %cst_64 = arith.constant dense<0.000000e+00> : vector<1x128xf32>
    %101 = tpu.matmul %48, %100, %cst_64 {dimension_numbers = #tpu.dot_dimension_numbers<[1], [0], [0], [1], [0, 0, 1, 1], [], []>} : vector<1x16xf32>, vector<16x128xf32>, vector<1x128xf32> -> vector<1x128xf32>
    %c5_65 = arith.constant 5 : index
    %102 = memref.load %arg2[%c5_65] : memref<8xf32, #tpu.memory_space<smem>>
    %103 = vector.broadcast %102 : f32 to vector<1x128xf32>
    %104 = arith.mulf %103, %101 : vector<1x128xf32>
    %c5_66 = arith.constant 5 : index
    %c0_67 = arith.constant 0 : index
    %105 = vector.load %arg5[%c5_66, %c0_67] : memref<8x128xf32, #tpu.memory_space<vmem>>, vector<1x128xf32>
    tpu.vector_store %arg5[%c5_66, %c0_67], %104 {strides = array<i32>} : memref<8x128xf32, #tpu.memory_space<vmem>>, vector<1x128xf32>,
    %c3_68 = arith.constant 3 : index
    %c0_69 = arith.constant 0 : index
    %c0_70 = arith.constant 0 : index
    %106 = vector.load %arg3[%c3_68, %c0_69, %c0_70] : memref<4x16x128xf32, #tpu.memory_space<vmem>>, vector<1x16x128xf32>
    %107 = vector.shape_cast %106 : vector<1x16x128xf32> to vector<16x128xf32>
    %108 = arith.mulf %47, %107 : vector<16x128xf32>
    %c6 = arith.constant 6 : index
    %c0_71 = arith.constant 0 : index
    %c0_72 = arith.constant 0 : index
    %109 = vector.load %arg4[%c6, %c0_71, %c0_72] : memref<8x16x128xf32, #tpu.memory_space<vmem>>, vector<1x16x128xf32>
    %110 = vector.shape_cast %109 : vector<1x16x128xf32> to vector<16x128xf32>
    %111 = arith.mulf %108, %110 : vector<16x128xf32>
    %cst_73 = arith.constant dense<0.000000e+00> : vector<1x128xf32>
    %112 = tpu.matmul %48, %111, %cst_73 {dimension_numbers = #tpu.dot_dimension_numbers<[1], [0], [0], [1], [0, 0, 1, 1], [], []>} : vector<1x16xf32>, vector<16x128xf32>, vector<1x128xf32> -> vector<1x128xf32>
    %c6_74 = arith.constant 6 : index
    %113 = memref.load %arg2[%c6_74] : memref<8xf32, #tpu.memory_space<smem>>
    %114 = vector.broadcast %113 : f32 to vector<1x128xf32>
    %115 = arith.mulf %114, %112 : vector<1x128xf32>
    %c6_75 = arith.constant 6 : index
    %c0_76 = arith.constant 0 : index
    %116 = vector.load %arg5[%c6_75, %c0_76] : memref<8x128xf32, #tpu.memory_space<vmem>>, vector<1x128xf32>
    tpu.vector_store %arg5[%c6_75, %c0_76], %115 {strides = array<i32>} : memref<8x128xf32, #tpu.memory_space<vmem>>, vector<1x128xf32>,
    %c7 = arith.constant 7 : index
    %c0_77 = arith.constant 0 : index
    %c0_78 = arith.constant 0 : index
    %117 = vector.load %arg4[%c7, %c0_77, %c0_78] : memref<8x16x128xf32, #tpu.memory_space<vmem>>, vector<1x16x128xf32>
    %118 = vector.shape_cast %117 : vector<1x16x128xf32> to vector<16x128xf32>
    %119 = arith.mulf %108, %118 : vector<16x128xf32>
    %cst_79 = arith.constant dense<0.000000e+00> : vector<1x128xf32>
    %120 = tpu.matmul %48, %119, %cst_79 {dimension_numbers = #tpu.dot_dimension_numbers<[1], [0], [0], [1], [0, 0, 1, 1], [], []>} : vector<1x16xf32>, vector<16x128xf32>, vector<1x128xf32> -> vector<1x128xf32>
    %c7_80 = arith.constant 7 : index
    %121 = memref.load %arg2[%c7_80] : memref<8xf32, #tpu.memory_space<smem>>
    %122 = vector.broadcast %121 : f32 to vector<1x128xf32>
    %123 = arith.mulf %122, %120 : vector<1x128xf32>
    %c7_81 = arith.constant 7 : index
    %c0_82 = arith.constant 0 : index
    %124 = vector.load %arg5[%c7_81, %c0_82] : memref<8x128xf32, #tpu.memory_space<vmem>>, vector<1x128xf32>
    tpu.vector_store %arg5[%c7_81, %c0_82], %123 {strides = array<i32>} : memref<8x128xf32, #tpu.memory_space<vmem>>, vector<1x128xf32>,
    %cst_83 = arith.constant 0.000000e+00 : f32
    %125 = vector.broadcast %cst_83 : f32 to vector<1x128xf32>
    %126 = arith.subf %125, %42 : vector<1x128xf32>
    %127 = math.exp %126 : vector<1x128xf32>
    %cst_84 = arith.constant 1.000000e+05 : f32
    %128 = vector.broadcast %cst_84 : f32 to vector<1x128xf32>
    %129 = arith.mulf %128, %127 : vector<1x128xf32>
    %c0_85 = arith.constant 0 : index
    %c0_86 = arith.constant 0 : index
    %130 = vector.load %arg6[%c0_85, %c0_86] : memref<1x128xf32, #tpu.memory_space<vmem>>, vector<1x128xf32>
    tpu.vector_store %arg6[%c0_85, %c0_86], %129 {strides = array<i32>} : memref<1x128xf32, #tpu.memory_space<vmem>>, vector<1x128xf32>,
    return
  }
  func.func @transform_0(%arg0: i32) -> i32 {
    %c0_i32 = arith.constant 0 : i32
    %c0_i32_0 = arith.constant 0 : i32
    return %c0_i32 : i32
  }
  func.func @transform_1(%arg0: i32) -> i32 {
    %c0_i32 = arith.constant 0 : i32
    %c0_i32_0 = arith.constant 0 : i32
    return %c0_i32 : i32
  }
  func.func @transform_2(%arg0: i32) -> (i32, i32, i32) {
    %c0_i32 = arith.constant 0 : i32
    %c0_i32_0 = arith.constant 0 : i32
    %c0_i32_1 = arith.constant 0 : i32
    return %c0_i32, %c0_i32_0, %arg0 : i32, i32, i32
  }
  func.func @transform_3(%arg0: i32) -> (i32, i32, i32) {
    %c0_i32 = arith.constant 0 : i32
    %c0_i32_0 = arith.constant 0 : i32
    %c0_i32_1 = arith.constant 0 : i32
    return %c0_i32, %c0_i32_0, %arg0 : i32, i32, i32
  }
  func.func @transform_4(%arg0: i32) -> (i32, i32) {
    %c0_i32 = arith.constant 0 : i32
    %c0_i32_0 = arith.constant 0 : i32
    return %c0_i32, %arg0 : i32, i32
  }
  func.func @transform_5(%arg0: i32) -> (i32, i32) {
    %c0_i32 = arith.constant 0 : i32
    %c0_i32_0 = arith.constant 0 : i32
    return %c0_i32, %arg0 : i32, i32
  }
}

</mosaic_0001>

<llo_original>
// kernel: tpu_custom_call.1
$region0: #{tpu_custom_call.1}
  #allocation0 [shape = 'u32[]', space=smem, size = 0x4, offset = 0x4, fixed_abs, tag = 'smem constant byte address 0x4 - core index']
  #allocation1 [shape = 'u32[144,128]{1,0:T(1,128)}', space=vmem, size = 0x12000, scoped, tag = 'internal scratch']
  %s0 = inlined_call_operand.hbm [shape: f32[4], index: 0, kind: input, shape index: {}]
  %s1 = inlined_call_operand.vmem [shape: f32[8], index: 1, kind: input, shape index: {}]
  %s2 = inlined_call_operand.hbm [shape: f32[4,16,256], index: 2, kind: input, shape index: {}]
  %s3 = inlined_call_operand.hbm [shape: f32[8,16,256], index: 3, kind: input, shape index: {}]
  %s4 = inlined_call_operand.hbm [shape: f32[8,256], index: 4, kind: output, shape index: {0}]
  %s5 = inlined_call_operand.hbm [shape: f32[1,256], index: 5, kind: output, shape index: {1}]
  %6 = xla_tuple %s4, %s5
  %s7 = sld [smem:[#allocation0]]
  $region73: #{tpu_custom_call.1} parent=0
    _
  %s9 = ssub.s32 1, %s7
  %s10 = scalar_select 0, %s9, %s7
  $region1: #{tpu_custom_call.1} parent=0
    #allocation2 [shape = 'u8[512]{0}', space=smem, size = 0x200, scoped, tag = 'input window, operand 0, single buffered']
    #allocation3 [shape = 's32[2]{0}', space=sflag, size = 0x8, scoped, tag = 'scoped memory for tpu_custom_call.1']
    #allocation4 [shape = 's32[2]{0}', space=sflag, size = 0x8, scoped, tag = 'scoped memory for tpu_custom_call.1']
    #allocation5 [shape = 's32[2]{0}', space=sflag, size = 0x8, scoped, tag = 'scoped memory for tpu_custom_call.1']
    #allocation6 [shape = 's32[2]{0}', space=sflag, size = 0x8, scoped, tag = 'scoped memory for tpu_custom_call.1']
    #allocation7 [shape = 'u8[512]{0}', space=smem, size = 0x200, scoped, tag = 'input window, operand 1, single buffered']
    #allocation8 [shape = 'u8[65536]{0}', space=vmem, size = 0x10000, scoped, tag = 'input window, operand 2']
    #allocation9 [shape = 'u8[131072]{0}', space=vmem, size = 0x20000, scoped, tag = 'input window, operand 3']
    #allocation10 [shape = 's32[2]{0}', space=sflag, size = 0x8, scoped, tag = 'scoped memory for tpu_custom_call.1']
    #allocation11 [shape = 'u8[8192]{0}', space=vmem, size = 0x2000, scoped, tag = 'output window, operand 0']
    #allocation12 [shape = 'u8[1024]{0}', space=vmem, size = 0x400, scoped, tag = 'output window, operand 1']
    #allocation13 [shape = 's32[2]{0}', space=sflag, size = 0x8, scoped, tag = 'scoped memory for tpu_custom_call.1']
    %11 = vsyncpa [#allocation5], 0
    %12 = vsyncpa [#allocation6], 0
    %13 = vsyncpa [#allocation3], 0
    %s14 = scalar_lea.sflag [#allocation3], 1
    %15 = vsyncpa %s14, 0
    %16 = vsyncpa [#allocation10], 0
    %s17 = scalar_lea.sflag [#allocation10], 1
    %18 = vsyncpa %s17, 0
    %19 = vsyncpa [#allocation4], 0
    %s20 = scalar_lea.sflag [#allocation4], 1
    %21 = vsyncpa %s20, 0
    %22 = vsyncpa [#allocation13], 0
    %s23 = scalar_lea.sflag [#allocation13], 1
    %24 = vsyncpa %s23, 0
    loop: start=0, step=1, limit=4
    $region2: #{tpu_custom_call.1} parent=1 // loop_pre_header
      _
    $region3: #{tpu_custom_call.1} parent=1 // loop_header
      %s26 = sphi 0, %s30
      %p27 = scmp.ge.s32.totalorder %s26, 4
      %s34 = sphi 0, %s34
      %s36 = sphi 0, %s34
      %s37 = sphi 0, %s36
      %s51 = sphi 0, %s37
      %s55 = sphi 0, %s55
      %s57 = sphi 0, %s55
      %s58 = sphi 0, %s57
      %s72 = sphi 0, %s58
      %s78 = sphi 0, %s80
      %s81 = sphi 0, %s78
      %s82 = sphi 0, %s81
      %s98 = sphi 0, %s82
      %s104 = sphi 0, %s106
      %s107 = sphi 0, %s104
      %s108 = sphi 0, %s107
      %s124 = sphi 0, %s108
      %s130 = sphi 0, %s132
      %s133 = sphi 0, %s130
      %s134 = sphi 0, %s133
      %s150 = sphi 0, %s134
      %s156 = sphi 0, %s158
      %s159 = sphi 0, %s156
      %s160 = sphi 0, %s159
      %s176 = sphi 0, %s160
    $region4: #{tpu_custom_call.1} parent=1 // loop_header_branch
      %29 = sbr.rel (%p27) target = $region8
    $region5: #{tpu_custom_call.1} parent=1 // loop_body
      %s31 = ssub.s32 %s26, 1
      %s32 = ssub.s32 %s26, 2
      %s33 = sadd.s32 %s26, 1
      %s35 = sadd.s32 %s34, 1
      %p38 = scmp.eq.s32.totalorder %s26, 1
      %p39 = scmp.ne.s32.totalorder %s34, %s36
      %p40 = scmp.eq.s32.totalorder %s26, 0
      %p41 = por %p39, %p40
      %p42 = scmp.ne.s32.totalorder %s34, %s36
      %p43 = scmp.eq.s32.totalorder %s31, 1
      %p44 = por %p42, %p43
      %p45 = scmp.ne.s32.totalorder %s36, %s37
      %p46 = scmp.eq.s32.totalorder %s31, 0
      %p47 = por %p45, %p46
      %p48 = scmp.ne.s32.totalorder %s36, %s37
      %p49 = scmp.eq.s32.totalorder %s32, 1
      %p50 = por %p48, %p49
      %p52 = scmp.ne.s32.totalorder %s37, %s51
      %p53 = scmp.eq.s32.totalorder %s32, 0
      %p54 = por %p52, %p53
      %s56 = sadd.s32 %s55, 1
      %p59 = scmp.eq.s32.totalorder %s26, 1
      %p60 = scmp.ne.s32.totalorder %s55, %s57
      %p61 = scmp.eq.s32.totalorder %s26, 0
      %p62 = por %p60, %p61
      %p63 = scmp.ne.s32.totalorder %s55, %s57
      %p64 = scmp.eq.s32.totalorder %s31, 1
      %p65 = por %p63, %p64
      %p66 = scmp.ne.s32.totalorder %s57, %s58
      %p67 = scmp.eq.s32.totalorder %s31, 0
      %p68 = por %p66, %p67
      %p69 = scmp.ne.s32.totalorder %s57, %s58
      %p70 = scmp.eq.s32.totalorder %s32, 1
      %p71 = por %p69, %p70
      %p73 = scmp.ne.s32.totalorder %s58, %s72
      %p74 = scmp.eq.s32.totalorder %s32, 0
      %p75 = por %p73, %p74
      %s76 = ssub.s32 %s26, %s33
      %p77 = scmp.eq.s32.totalorder %s76, 0
      %s79 = sadd.s32 %s78, 1
      %s80 = scalar_select %p77, %s78, %s79
      %p83 = pneg %p77
      %p84 = scmp.eq.s32.totalorder %s26, 1
      %p85 = por %p83, %p84
      %p86 = scmp.ne.s32.totalorder %s78, %s81
      %p87 = scmp.eq.s32.totalorder %s26, 0
      %p88 = por %p86, %p87
      %p89 = scmp.ne.s32.totalorder %s78, %s81
      %p90 = scmp.eq.s32.totalorder %s31, 1
      %p91 = por %p89, %p90
      %p92 = scmp.ne.s32.totalorder %s81, %s82
      %p93 = scmp.eq.s32.totalorder %s31, 0
      %p94 = por %p92, %p93
      %p95 = scmp.ne.s32.totalorder %s81, %s82
      %p96 = scmp.eq.s32.totalorder %s32, 1
      %p97 = por %p95, %p96
      %p99 = scmp.ne.s32.totalorder %s82, %s98
      %p100 = scmp.eq.s32.totalorder %s32, 0
      %p101 = por %p99, %p100
      %s102 = ssub.s32 %s26, %s33
      %p103 = scmp.eq.s32.totalorder %s102, 0
      %s105 = sadd.s32 %s104, 1
      %s106 = scalar_select %p103, %s104, %s105
      %p109 = pneg %p103
      %p110 = scmp.eq.s32.totalorder %s26, 1
      %p111 = por %p109, %p110
      %p112 = scmp.ne.s32.totalorder %s104, %s107
      %p113 = scmp.eq.s32.totalorder %s26, 0
      %p114 = por %p112, %p113
      %p115 = scmp.ne.s32.totalorder %s104, %s107
      %p116 = scmp.eq.s32.totalorder %s31, 1
      %p117 = por %p115, %p116
      %p118 = scmp.ne.s32.totalorder %s107, %s108
      %p119 = scmp.eq.s32.totalorder %s31, 0
      %p120 = por %p118, %p119
      %p121 = scmp.ne.s32.totalorder %s107, %s108
      %p122 = scmp.eq.s32.totalorder %s32, 1
      %p123 = por %p121, %p122
      %p125 = scmp.ne.s32.totalorder %s108, %s124
      %p126 = scmp.eq.s32.totalorder %s32, 0
      %p127 = por %p125, %p126
      %s128 = ssub.s32 %s26, %s33
      %p129 = scmp.eq.s32.totalorder %s128, 0
      %s131 = sadd.s32 %s130, 1
      %s132 = scalar_select %p129, %s130, %s131
      %p135 = pneg %p129
      %p136 = scmp.eq.s32.totalorder %s26, 1
      %p137 = por %p135, %p136
      %p138 = scmp.ne.s32.totalorder %s130, %s133
      %p139 = scmp.eq.s32.totalorder %s26, 0
      %p140 = por %p138, %p139
      %p141 = scmp.ne.s32.totalorder %s130, %s133
      %p142 = scmp.eq.s32.totalorder %s31, 1
      %p143 = por %p141, %p142
      %p144 = scmp.ne.s32.totalorder %s133, %s134
      %p145 = scmp.eq.s32.totalorder %s31, 0
      %p146 = por %p144, %p145
      %p147 = scmp.ne.s32.totalorder %s133, %s134
      %p148 = scmp.eq.s32.totalorder %s32, 1
      %p149 = por %p147, %p148
      %p151 = scmp.ne.s32.totalorder %s134, %s150
      %p152 = scmp.eq.s32.totalorder %s32, 0
      %p153 = por %p151, %p152
      %s154 = ssub.s32 %s26, %s33
      %p155 = scmp.eq.s32.totalorder %s154, 0
      %s157 = sadd.s32 %s156, 1
      %s158 = scalar_select %p155, %s156, %s157
      %p161 = pneg %p155
      %p162 = scmp.eq.s32.totalorder %s26, 1
      %p163 = por %p161, %p162
      %p164 = scmp.ne.s32.totalorder %s156, %s159
      %p165 = scmp.eq.s32.totalorder %s26, 0
      %p166 = por %p164, %p165
      %p167 = scmp.ne.s32.totalorder %s156, %s159
      %p168 = scmp.eq.s32.totalorder %s31, 1
      %p169 = por %p167, %p168
      %p170 = scmp.ne.s32.totalorder %s159, %s160
      %p171 = scmp.eq.s32.totalorder %s31, 0
      %p172 = por %p170, %p171
      %p173 = scmp.ne.s32.totalorder %s159, %s160
      %p174 = scmp.eq.s32.totalorder %s32, 1
      %p175 = por %p173, %p174
      %p177 = scmp.ne.s32.totalorder %s160, %s176
      %p178 = scmp.eq.s32.totalorder %s32, 0
      %p179 = por %p177, %p178
      %p180 = scmp.le.s32.totalorder 1, %s26
      %p181 = scmp.lt.s32.totalorder %s26, 3
      %p182 = pnand %p180, %p181
      %p183 = pneg %p182
      // Predicated region
      $region9: #{tpu_custom_call.1} parent=5 // pred_check
        _
      $region10: #{tpu_custom_call.1} parent=5 // pred_check_branch
        %185 = sbr.rel (%p182) target = $region12
      $region11: #{tpu_custom_call.1} parent=5 // pred_region
        %s186 = ssub.s32 %s26, 1
        // Predicated region
        $region13: #{tpu_custom_call.1} parent=11 // pred_check
          %p187 = pneg %p47
        $region14: #{tpu_custom_call.1} parent=11 // pred_check_branch
          %189 = sbr.rel (%p187) target = $region16
        $region15: #{tpu_custom_call.1} parent=11 // pred_region
          %s191 = ssub.s32 16, 16
          %192 = vsyncadd [#allocation5], %s191
          %195 = dma.hbm_to_smem %s0, 16, [#allocation2], [#allocation5]
        $region16: #{tpu_custom_call.1} parent=11 // pred_fallthru
          _
        // Predicated region
        $region17: #{tpu_custom_call.1} parent=11 // pred_check
          %p196 = pneg %p68
        $region18: #{tpu_custom_call.1} parent=11 // pred_check_branch
          %198 = sbr.rel (%p196) target = $region20
        $region19: #{tpu_custom_call.1} parent=11 // pred_region
          %s200 = ssub.s32 16, 16
          %201 = vsyncadd [#allocation6], %s200
          %s203 = sshll.u32 %s1, 4
          %s204 = int_to_ptr.vmem [resolvable:$true] %s203
          %206 = dma.vmem_to_smem %s204, 16, [#allocation7], [#allocation6]
        $region20: #{tpu_custom_call.1} parent=11 // pred_fallthru
          _
      $region12: #{tpu_custom_call.1} parent=5 // pred_fallthru
        _
      %p207 = scmp.lt.s32.totalorder %s26, 2
      // Predicated region
      $region21: #{tpu_custom_call.1} parent=5 // pred_check
        %p208 = pneg %p207
      $region22: #{tpu_custom_call.1} parent=5 // pred_check_branch
        %210 = sbr.rel (%p208) target = $region24
      $region23: #{tpu_custom_call.1} parent=5 // pred_region
        // Predicated region
        $region25: #{tpu_custom_call.1} parent=23 // pred_check
          %p211 = pneg %p88
        $region26: #{tpu_custom_call.1} parent=23 // pred_check_branch
          %213 = sbr.rel (%p211) target = $region28
        $region27: #{tpu_custom_call.1} parent=23 // pred_region
          %s214 = sand.u32 %s78, 1
          %s215 = scalar_lea.sflag [#allocation3], %s214
          %s216 = sand.u32 %s78, 1
          %s217 = smul.addr %s216, 64
          %s218 = scalar_lea.vmem [#allocation8], %s217
          %s220 = ssub.s32 1024, 1024
          %221 = vsyncadd %s215, %s220
          %s222 = smul.addr %s26, 128
          %s223 = scalar_lea.hbm %s2, %s222
          %s224 = sshll.u32 %s218, 4
          %s225 = int_to_ptr.vmem [resolvable:$true] %s224
          %230 = dma.hbm_to_vmem [thread:$0]  %s223, 1024, %s225, %s215, 256, 128, 8
        $region28: #{tpu_custom_call.1} parent=23 // pred_fallthru
          _
        // Predicated region
        $region29: #{tpu_custom_call.1} parent=23 // pred_check
          %p231 = pneg %p114
        $region30: #{tpu_custom_call.1} parent=23 // pred_check_branch
          %233 = sbr.rel (%p231) target = $region32
        $region31: #{tpu_custom_call.1} parent=23 // pred_region
          %s234 = sand.u32 %s104, 1
          %s235 = scalar_lea.sflag [#allocation10], %s234
          %s236 = sand.u32 %s104, 1
          %s237 = smul.addr %s236, 128
          %s238 = scalar_lea.vmem [#allocation9], %s237
          %s240 = ssub.s32 2048, 2048
          %241 = vsyncadd %s235, %s240
          %s242 = smul.addr %s26, 128
          %s243 = scalar_lea.hbm %s3, %s242
          %s244 = sshll.u32 %s238, 4
          %s245 = int_to_ptr.vmem [resolvable:$true] %s244
          %250 = dma.hbm_to_vmem [thread:$0]  %s243, 2048, %s245, %s235, 256, 128, 8
        $region32: #{tpu_custom_call.1} parent=23 // pred_fallthru
          _
      $region24: #{tpu_custom_call.1} parent=5 // pred_fallthru
        _
      %p251 = scmp.le.s32.totalorder 1, %s26
      %p252 = scmp.lt.s32.totalorder %s26, 3
      %p253 = pnand %p251, %p252
      %p254 = pneg %p253
      // Predicated region
      $region33: #{tpu_custom_call.1} parent=5 // pred_check
        _
      $region34: #{tpu_custom_call.1} parent=5 // pred_check_branch
        %256 = sbr.rel (%p253) target = $region36
      $region35: #{tpu_custom_call.1} parent=5 // pred_region
        %s257 = ssub.s32 %s26, 1
        // Predicated region
        $region37: #{tpu_custom_call.1} parent=35 // pred_check
          %p258 = pneg %p47
        $region38: #{tpu_custom_call.1} parent=35 // pred_check_branch
          %260 = sbr.rel (%p258) target = $region40
        $region39: #{tpu_custom_call.1} parent=35 // pred_region
          %261 = dma.done [#allocation5], 16
        $region40: #{tpu_custom_call.1} parent=35 // pred_fallthru
          _
        // Predicated region
        $region41: #{tpu_custom_call.1} parent=35 // pred_check
          %p262 = pneg %p68
        $region42: #{tpu_custom_call.1} parent=35 // pred_check_branch
          %264 = sbr.rel (%p262) target = $region44
        $region43: #{tpu_custom_call.1} parent=35 // pred_region
          %265 = dma.done [#allocation6], 16
        $region44: #{tpu_custom_call.1} parent=35 // pred_fallthru
          _
        %s266 = sand.u32 %s81, 1
        %s267 = scalar_lea.sflag [#allocation3], %s266
        %s268 = sand.u32 %s81, 1
        %s269 = smul.addr %s268, 64
        %s270 = scalar_lea.vmem [#allocation8], %s269
        // Predicated region
        $region45: #{tpu_custom_call.1} parent=35 // pred_check
          %p271 = pneg %p94
        $region46: #{tpu_custom_call.1} parent=35 // pred_check_branch
          %273 = sbr.rel (%p271) target = $region48
        $region47: #{tpu_custom_call.1} parent=35 // pred_region
          %274 = dma.done %s267, 1024
        $region48: #{tpu_custom_call.1} parent=35 // pred_fallthru
          _
        %s275 = sand.u32 %s107, 1
        %s276 = scalar_lea.sflag [#allocation10], %s275
        %s277 = sand.u32 %s107, 1
        %s278 = smul.addr %s277, 128
        %s279 = scalar_lea.vmem [#allocation9], %s278
        // Predicated region
        $region49: #{tpu_custom_call.1} parent=35 // pred_check
          %p280 = pneg %p120
        $region50: #{tpu_custom_call.1} parent=35 // pred_check_branch
          %282 = sbr.rel (%p280) target = $region52
        $region51: #{tpu_custom_call.1} parent=35 // pred_region
          %283 = dma.done %s276, 2048
        $region52: #{tpu_custom_call.1} parent=35 // pred_fallthru
          _
        %284 = sfence
        %p285 = pneg %p47
        %p286 = pneg %p44
        %p287 = pneg %p68
        %p288 = pneg %p65
        %s289 = sand.u32 %s81, 1
        %s290 = scalar_lea.sflag [#allocation3], %s289
        %s291 = sand.u32 %s81, 1
        %s292 = smul.addr %s291, 64
        %s293 = scalar_lea.vmem [#allocation8], %s292
        %p294 = pneg %p94
        %p295 = pneg %p91
        %s296 = sand.u32 %s107, 1
        %s297 = scalar_lea.sflag [#allocation10], %s296
        %s298 = sand.u32 %s107, 1
        %s299 = smul.addr %s298, 128
        %s300 = scalar_lea.vmem [#allocation9], %s299
        %p301 = pneg %p120
        %p302 = pneg %p117
        %p303 = pneg %p146
        %p304 = pneg %p143
        %s305 = sand.u32 %s133, 1
        %s306 = scalar_lea.sflag [#allocation4], %s305
        %s307 = sand.u32 %s133, 1
        %s308 = smul.addr %s307, 8
        %s309 = scalar_lea.vmem [#allocation11], %s308
        %p310 = pneg %p172
        %p311 = pneg %p169
        %s312 = sand.u32 %s159, 1
        %s313 = scalar_lea.sflag [#allocation13], %s312
        %s314 = sand.u32 %s159, 1
        %s315 = scalar_lea.vmem [#allocation12], %s314
        %s316 = sld [smem:[#allocation2]]
        %v317 = vld [vmem:[%s270] sm:$0xff]
        %v318 = vld [vmem:[%s270 + $0x8] sm:$0xff]
        %v319 = vstv %s316
        %v320 = vmul.f32 %v319, %v317
        %v321 = vmul.f32 %v319, %v318
        %s322 = sld [smem:[#allocation2 + $0x1]]
        %s323 = scalar_lea.vmem %s270, 16 [#allocation8]
        %v324 = vld [vmem:[%s323] sm:$0xff]
        %v325 = vld [vmem:[%s323 + $0x8] sm:$0xff]
        %v326 = vstv %s322
        %v327 = vmul.f32 %v326, %v324
        %v328 = vmul.f32 %v326, %v325
        %v329 = vadd.f32 %v320, %v327
        %v330 = vadd.f32 %v321, %v328
        %s331 = sld [smem:[#allocation2 + $0x2]]
        %s332 = scalar_lea.vmem %s270, 32 [#allocation8]
        %v333 = vld [vmem:[%s332] sm:$0xff]
        %v334 = vld [vmem:[%s332 + $0x8] sm:$0xff]
        %v335 = vstv %s331
        %v336 = vmul.f32 %v335, %v333
        %v337 = vmul.f32 %v335, %v334
        %v338 = vadd.f32 %v329, %v336
        %v339 = vadd.f32 %v330, %v337
        %s340 = sld [smem:[#allocation2 + $0x3]]
        %s341 = scalar_lea.vmem %s270, 48 [#allocation8]
        %v342 = vld [vmem:[%s341] sm:$0xff]
        %v343 = vld [vmem:[%s341 + $0x8] sm:$0xff]
        %v344 = vstv %s340
        %v345 = vmul.f32 %v344, %v342
        %v346 = vmul.f32 %v344, %v343
        %v347 = vadd.f32 %v338, %v345
        %v348 = vadd.f32 %v339, %v346
        %vm351 = vcmask 1040384
        %v352 = vrot.slane %v347, 7
        %v353 = vrot.slane %v348, 7
        %v354 = vsel %vm351, %v352, %v353
        %v357 = vsel %vm351, 0.0, %v352
        %v358 = vadd.f32 %v347, %v357
        %v359 = vadd.f32 %v348, %v354
        %vm362 = vcmask 1041408
        %v363 = vrot.slane %v358, 6
        %v364 = vrot.slane %v359, 6
        %v365 = vsel %vm362, %v363, %v364
        %v368 = vsel %vm362, 0.0, %v363
        %v369 = vadd.f32 %v358, %v368
        %v370 = vadd.f32 %v359, %v365
        %vm373 = vcmask 1043456
        %v374 = vrot.slane %v369, 4
        %v375 = vrot.slane %v370, 4
        %v376 = vsel %vm373, %v374, %v375
        %v379 = vsel %vm373, 0.0, %v374
        %v380 = vadd.f32 %v369, %v379
        %v381 = vadd.f32 %v370, %v376
        %v382 = vadd.f32 %v380, 0.0
        %v383 = vadd.f32 %v381, %v380
        %v386 = vrot.slane %v382, 7
        %v387 = vrot.slane %v383, 7
        %v388 = vsel %vm351, %v386, %v387
        %v391 = vsel %vm351, 0.0, %v386
        %v392 = vsub.f32 0.0, %v391
        %v393 = vsub.f32 0.0, %v388
        %v394 = vmul.f32 %v392, 1.442695
        %v395 = vpow.pop %v394
        %v396 = vmul.f32 %v393, 1.442695
        %v397 = vpow.pop %v396
        %v398 = vmul.f32 %v395, 100000.0
        %v399 = vmul.f32 %v397, 100000.0
        %v400 = vmul.f32 %v398, %v317
        %v401 = vmul.f32 %v399, %v318
        %v402 = vld [vmem:[%s279] sm:$0xff]
        %v403 = vld [vmem:[%s279 + $0x8] sm:$0xff]
        %v404 = vmul.f32 %v400, %v402
        %v405 = vmul.f32 %v401, %v403
        %vm406 = vcmask 130048
        %v408 = vsel %vm406, 1.0, 0
        %410 = vmatprep.subr.mxu0 0.0
        %411 = vmatpush1.msra.mxu0 %v404
        %412 = vmatprep.subr.mxu0 0.0
        %413 = vmatpush1.msra.mxu0 %v405
        %414 = vmatprep.subr.mxu0 0.0
        %415 = vmatpush1.msra.mxu0 0.0
        %416 = vmatprep.subr.mxu0 0.0
        %417 = vmatpush1.msra.mxu0 0.0
        %418 = vmatprep.subr.mxu0 0.0
        %419 = vmatpush1.msra.mxu0 0.0
        %420 = vmatprep.subr.mxu0 0.0
        %421 = vmatpush1.msra.mxu0 0.0
        %422 = vmatprep.subr.mxu0 0.0
        %423 = vmatpush1.msra.mxu0 0.0
        %424 = vmatprep.subr.mxu0 0.0
        %425 = vmatpush1.msra.mxu0 0.0
        %426 = vmatprep.subr.mxu0 0.0
        %427 = vmatpush1.msra.mxu0 0.0
        %428 = vmatprep.subr.mxu0 0.0
        %429 = vmatpush1.msra.mxu0 0.0
        %430 = vmatprep.subr.mxu0 0.0
        %431 = vmatpush1.msra.mxu0 0.0
        %432 = vmatprep.subr.mxu0 0.0
        %433 = vmatpush1.msra.mxu0 0.0
        %434 = vmatprep.subr.mxu0 0.0
        %435 = vmatpush1.msra.mxu0 0.0
        %436 = vmatprep.subr.mxu0 0.0
        %437 = vmatpush1.msra.mxu0 0.0
        %438 = vmatprep.subr.mxu0 0.0
        %439 = vmatpush1.msra.mxu0 0.0
        %440 = vmatprep.subr.mxu0 0.0
        %441 = vmatpush1.msra.mxu0 0.0
        %442 = vmatprep.subr.mxu0 0.0
        %443 = vmatpush1.msra.mxu0 0.0
        %444 = vmatprep.subr.mxu0 0.0
        %445 = vmatpush1.msra.mxu0 0.0
        %446 = vmatprep.subr.mxu0 0.0
        %447 = vmatpush1.msra.mxu0 0.0
        %448 = vmatprep.subr.mxu0 0.0
        %449 = vmatpush1.msra.mxu0 0.0
        %450 = vmatprep.subr.mxu0 0.0
        %451 = vmatpush1.msra.mxu0 0.0
        %452 = vmatprep.subr.mxu0 0.0
        %453 = vmatpush1.msra.mxu0 0.0
        %454 = vmatprep.subr.mxu0 0.0
        %455 = vmatpush1.msra.mxu0 0.0
        %456 = vmatprep.subr.mxu0 0.0
        %457 = vmatpush1.msra.mxu0 0.0
        %458 = vmatprep.subr.mxu0 0.0
        %459 = vmatpush1.msra.mxu0 0.0
        %460 = vmatprep.subr.mxu0 0.0
        %461 = vmatpush1.msra.mxu0 0.0
        %462 = vmatprep.subr.mxu0 0.0
        %463 = vmatpush1.msra.mxu0 0.0
        %464 = vmatprep.subr.mxu0 0.0
        %465 = vmatpush1.msra.mxu0 0.0
        %466 = vmatprep.subr.mxu0 0.0
        %467 = vmatpush1.msra.mxu0 0.0
        %468 = vmatprep.subr.mxu0 0.0
        %469 = vmatpush1.msra.mxu0 0.0
        %470 = vmatprep.subr.mxu0 0.0
        %471 = vmatpush1.msra.mxu0 0.0
        %472 = vmatprep.subr.mxu0 0.0
        %473 = vmatpush1.msra.mxu0 0.0
        %474 = vmatprep.mubr.f32.mxu0 0.0
        %475 = vmatmul.mubr.f32.gmra.mrb[0].mxu0 %v408
        %v476 = vpop.f32.mrb[0].mxu0
        %v477 = vadd.f32 0.0, %v476
        %v478 = vpop.f32.mrb[0].mxu0
        %479 = vdwg.mxu0
        %s480 = sld [smem:[#allocation7]]
        %v481 = vstv %s480
        %v482 = vmul.f32 %v481, %v477
        %483 = vst [vmem:[%s309] sm:$0x1] %v482
        %s484 = scalar_lea.vmem %s279, 16 [#allocation9]
        %v485 = vld [vmem:[%s484] sm:$0xff]
        %v486 = vld [vmem:[%s484 + $0x8] sm:$0xff]
        %v487 = vmul.f32 %v400, %v485
        %v488 = vmul.f32 %v401, %v486
        %489 = vmatprep.subr.mxu0 0.0
        %490 = vmatpush1.msra.mxu0 %v487
        %491 = vmatprep.subr.mxu0 0.0
        %492 = vmatpush1.msra.mxu0 %v488
        %493 = vmatprep.subr.mxu0 0.0
        %494 = vmatpush1.msra.mxu0 0.0
        %495 = vmatprep.subr.mxu0 0.0
        %496 = vmatpush1.msra.mxu0 0.0
        %497 = vmatprep.subr.mxu0 0.0
        %498 = vmatpush1.msra.mxu0 0.0
        %499 = vmatprep.subr.mxu0 0.0
        %500 = vmatpush1.msra.mxu0 0.0
        %501 = vmatprep.subr.mxu0 0.0
        %502 = vmatpush1.msra.mxu0 0.0
        %503 = vmatprep.subr.mxu0 0.0
        %504 = vmatpush1.msra.mxu0 0.0
        %505 = vmatprep.subr.mxu0 0.0
        %506 = vmatpush1.msra.mxu0 0.0
        %507 = vmatprep.subr.mxu0 0.0
        %508 = vmatpush1.msra.mxu0 0.0
        %509 = vmatprep.subr.mxu0 0.0
        %510 = vmatpush1.msra.mxu0 0.0
        %511 = vmatprep.subr.mxu0 0.0
        %512 = vmatpush1.msra.mxu0 0.0
        %513 = vmatprep.subr.mxu0 0.0
        %514 = vmatpush1.msra.mxu0 0.0
        %515 = vmatprep.subr.mxu0 0.0
        %516 = vmatpush1.msra.mxu0 0.0
        %517 = vmatprep.subr.mxu0 0.0
        %518 = vmatpush1.msra.mxu0 0.0
        %519 = vmatprep.subr.mxu0 0.0
        %520 = vmatpush1.msra.mxu0 0.0
        %521 = vmatprep.subr.mxu0 0.0
        %522 = vmatpush1.msra.mxu0 0.0
        %523 = vmatprep.subr.mxu0 0.0
        %524 = vmatpush1.msra.mxu0 0.0
        %525 = vmatprep.subr.mxu0 0.0
        %526 = vmatpush1.msra.mxu0 0.0
        %527 = vmatprep.subr.mxu0 0.0
        %528 = vmatpush1.msra.mxu0 0.0
        %529 = vmatprep.subr.mxu0 0.0
        %530 = vmatpush1.msra.mxu0 0.0
        %531 = vmatprep.subr.mxu0 0.0
        %532 = vmatpush1.msra.mxu0 0.0
        %533 = vmatprep.subr.mxu0 0.0
        %534 = vmatpush1.msra.mxu0 0.0
        %535 = vmatprep.subr.mxu0 0.0
        %536 = vmatpush1.msra.mxu0 0.0
        %537 = vmatprep.subr.mxu0 0.0
        %538 = vmatpush1.msra.mxu0 0.0
        %539 = vmatprep.subr.mxu0 0.0
        %540 = vmatpush1.msra.mxu0 0.0
        %541 = vmatprep.subr.mxu0 0.0
        %542 = vmatpush1.msra.mxu0 0.0
        %543 = vmatprep.subr.mxu0 0.0
        %544 = vmatpush1.msra.mxu0 0.0
        %545 = vmatprep.subr.mxu0 0.0
        %546 = vmatpush1.msra.mxu0 0.0
        %547 = vmatprep.subr.mxu0 0.0
        %548 = vmatpush1.msra.mxu0 0.0
        %549 = vmatprep.subr.mxu0 0.0
        %550 = vmatpush1.msra.mxu0 0.0
        %551 = vmatprep.subr.mxu0 0.0
        %552 = vmatpush1.msra.mxu0 0.0
        %553 = vmatprep.mubr.f32.mxu0 0.0
        %554 = vmatmul.mubr.f32.gmra.mrb[0].mxu0 %v408
        %v555 = vpop.f32.mrb[0].mxu0
        %v556 = vadd.f32 0.0, %v555
        %v557 = vpop.f32.mrb[0].mxu0
        %558 = vdwg.mxu0
        %s559 = sld [smem:[#allocation7 + $0x1]]
        %v560 = vstv %s559
        %v561 = vmul.f32 %v560, %v556
        %562 = vst [vmem:[%s309 + $0x1] sm:$0x1] %v561
        %v563 = vld [vmem:[%s323] sm:$0xff]
        %v564 = vld [vmem:[%s323 + $0x8] sm:$0xff]
        %v565 = vmul.f32 %v398, %v563
        %v566 = vmul.f32 %v399, %v564
        %s567 = scalar_lea.vmem %s279, 32 [#allocation9]
        %v568 = vld [vmem:[%s567] sm:$0xff]
        %v569 = vld [vmem:[%s567 + $0x8] sm:$0xff]
        %v570 = vmul.f32 %v565, %v568
        %v571 = vmul.f32 %v566, %v569
        %572 = vmatprep.subr.mxu0 0.0
        %573 = vmatpush1.msra.mxu0 %v570
        %574 = vmatprep.subr.mxu0 0.0
        %575 = vmatpush1.msra.mxu0 %v571
        %576 = vmatprep.subr.mxu0 0.0
        %577 = vmatpush1.msra.mxu0 0.0
        %578 = vmatprep.subr.mxu0 0.0
        %579 = vmatpush1.msra.mxu0 0.0
        %580 = vmatprep.subr.mxu0 0.0
        %581 = vmatpush1.msra.mxu0 0.0
        %582 = vmatprep.subr.mxu0 0.0
        %583 = vmatpush1.msra.mxu0 0.0
        %584 = vmatprep.subr.mxu0 0.0
        %585 = vmatpush1.msra.mxu0 0.0
        %586 = vmatprep.subr.mxu0 0.0
        %587 = vmatpush1.msra.mxu0 0.0
        %588 = vmatprep.subr.mxu0 0.0
        %589 = vmatpush1.msra.mxu0 0.0
        %590 = vmatprep.subr.mxu0 0.0
        %591 = vmatpush1.msra.mxu0 0.0
        %592 = vmatprep.subr.mxu0 0.0
        %593 = vmatpush1.msra.mxu0 0.0
        %594 = vmatprep.subr.mxu0 0.0
        %595 = vmatpush1.msra.mxu0 0.0
        %596 = vmatprep.subr.mxu0 0.0
        %597 = vmatpush1.msra.mxu0 0.0
        %598 = vmatprep.subr.mxu0 0.0
        %599 = vmatpush1.msra.mxu0 0.0
        %600 = vmatprep.subr.mxu0 0.0
        %601 = vmatpush1.msra.mxu0 0.0
        %602 = vmatprep.subr.mxu0 0.0
        %603 = vmatpush1.msra.mxu0 0.0
        %604 = vmatprep.subr.mxu0 0.0
        %605 = vmatpush1.msra.mxu0 0.0
        %606 = vmatprep.subr.mxu0 0.0
        %607 = vmatpush1.msra.mxu0 0.0
        %608 = vmatprep.subr.mxu0 0.0
        %609 = vmatpush1.msra.mxu0 0.0
        %610 = vmatprep.subr.mxu0 0.0
        %611 = vmatpush1.msra.mxu0 0.0
        %612 = vmatprep.subr.mxu0 0.0
        %613 = vmatpush1.msra.mxu0 0.0
        %614 = vmatprep.subr.mxu0 0.0
        %615 = vmatpush1.msra.mxu0 0.0
        %616 = vmatprep.subr.mxu0 0.0
        %617 = vmatpush1.msra.mxu0 0.0
        %618 = vmatprep.subr.mxu0 0.0
        %619 = vmatpush1.msra.mxu0 0.0
        %620 = vmatprep.subr.mxu0 0.0
        %621 = vmatpush1.msra.mxu0 0.0
        %622 = vmatprep.subr.mxu0 0.0
        %623 = vmatpush1.msra.mxu0 0.0
        %624 = vmatprep.subr.mxu0 0.0
        %625 = vmatpush1.msra.mxu0 0.0
        %626 = vmatprep.subr.mxu0 0.0
        %627 = vmatpush1.msra.mxu0 0.0
        %628 = vmatprep.subr.mxu0 0.0
        %629 = vmatpush1.msra.mxu0 0.0
        %630 = vmatprep.subr.mxu0 0.0
        %631 = vmatpush1.msra.mxu0 0.0
        %632 = vmatprep.subr.mxu0 0.0
        %633 = vmatpush1.msra.mxu0 0.0
        %634 = vmatprep.subr.mxu0 0.0
        %635 = vmatpush1.msra.mxu0 0.0
        %636 = vmatprep.mubr.f32.mxu0 0.0
        %637 = vmatmul.mubr.f32.gmra.mrb[0].mxu0 %v408
        %v638 = vpop.f32.mrb[0].mxu0
        %v639 = vadd.f32 0.0, %v638
        %v640 = vpop.f32.mrb[0].mxu0
        %641 = vdwg.mxu0
        %s642 = sld [smem:[#allocation7 + $0x2]]
        %v643 = vstv %s642
        %v644 = vmul.f32 %v643, %v639
        %645 = vst [vmem:[%s309 + $0x2] sm:$0x1] %v644
        %v646 = vld [vmem:[%s332] sm:$0xff]
        %v647 = vld [vmem:[%s332 + $0x8] sm:$0xff]
        %v648 = vmul.f32 %v398, %v646
        %v649 = vmul.f32 %v399, %v647
        %s650 = scalar_lea.vmem %s279, 48 [#allocation9]
        %v651 = vld [vmem:[%s650] sm:$0xff]
        %v652 = vld [vmem:[%s650 + $0x8] sm:$0xff]
        %v653 = vmul.f32 %v648, %v651
        %v654 = vmul.f32 %v649, %v652
        %655 = vmatprep.subr.mxu0 0.0
        %656 = vmatpush1.msra.mxu0 %v653
        %657 = vmatprep.subr.mxu0 0.0
        %658 = vmatpush1.msra.mxu0 %v654
        %659 = vmatprep.subr.mxu0 0.0
        %660 = vmatpush1.msra.mxu0 0.0
        %661 = vmatprep.subr.mxu0 0.0
        %662 = vmatpush1.msra.mxu0 0.0
        %663 = vmatprep.subr.mxu0 0.0
        %664 = vmatpush1.msra.mxu0 0.0
        %665 = vmatprep.subr.mxu0 0.0
        %666 = vmatpush1.msra.mxu0 0.0
        %667 = vmatprep.subr.mxu0 0.0
        %668 = vmatpush1.msra.mxu0 0.0
        %669 = vmatprep.subr.mxu0 0.0
        %670 = vmatpush1.msra.mxu0 0.0
        %671 = vmatprep.subr.mxu0 0.0
        %672 = vmatpush1.msra.mxu0 0.0
        %673 = vmatprep.subr.mxu0 0.0
        %674 = vmatpush1.msra.mxu0 0.0
        %675 = vmatprep.subr.mxu0 0.0
        %676 = vmatpush1.msra.mxu0 0.0
        %677 = vmatprep.subr.mxu0 0.0
        %678 = vmatpush1.msra.mxu0 0.0
        %679 = vmatprep.subr.mxu0 0.0
        %680 = vmatpush1.msra.mxu0 0.0
        %681 = vmatprep.subr.mxu0 0.0
        %682 = vmatpush1.msra.mxu0 0.0
        %683 = vmatprep.subr.mxu0 0.0
        %684 = vmatpush1.msra.mxu0 0.0
        %685 = vmatprep.subr.mxu0 0.0
        %686 = vmatpush1.msra.mxu0 0.0
        %687 = vmatprep.subr.mxu0 0.0
        %688 = vmatpush1.msra.mxu0 0.0
        %689 = vmatprep.subr.mxu0 0.0
        %690 = vmatpush1.msra.mxu0 0.0
        %691 = vmatprep.subr.mxu0 0.0
        %692 = vmatpush1.msra.mxu0 0.0
        %693 = vmatprep.subr.mxu0 0.0
        %694 = vmatpush1.msra.mxu0 0.0
        %695 = vmatprep.subr.mxu0 0.0
        %696 = vmatpush1.msra.mxu0 0.0
        %697 = vmatprep.subr.mxu0 0.0
        %698 = vmatpush1.msra.mxu0 0.0
        %699 = vmatprep.subr.mxu0 0.0
        %700 = vmatpush1.msra.mxu0 0.0
        %701 = vmatprep.subr.mxu0 0.0
        %702 = vmatpush1.msra.mxu0 0.0
        %703 = vmatprep.subr.mxu0 0.0
        %704 = vmatpush1.msra.mxu0 0.0
        %705 = vmatprep.subr.mxu0 0.0
        %706 = vmatpush1.msra.mxu0 0.0
        %707 = vmatprep.subr.mxu0 0.0
        %708 = vmatpush1.msra.mxu0 0.0
        %709 = vmatprep.subr.mxu0 0.0
        %710 = vmatpush1.msra.mxu0 0.0
        %711 = vmatprep.subr.mxu0 0.0
        %712 = vmatpush1.msra.mxu0 0.0
        %713 = vmatprep.subr.mxu0 0.0
        %714 = vmatpush1.msra.mxu0 0.0
        %715 = vmatprep.subr.mxu0 0.0
        %716 = vmatpush1.msra.mxu0 0.0
        %717 = vmatprep.subr.mxu0 0.0
        %718 = vmatpush1.msra.mxu0 0.0
        %719 = vmatprep.mubr.f32.mxu0 0.0
        %720 = vmatmul.mubr.f32.gmra.mrb[0].mxu0 %v408
        %v721 = vpop.f32.mrb[0].mxu0
        %v722 = vadd.f32 0.0, %v721
        %v723 = vpop.f32.mrb[0].mxu0
        %724 = vdwg.mxu0
        %s725 = sld [smem:[#allocation7 + $0x3]]
        %v726 = vstv %s725
        %v727 = vmul.f32 %v726, %v722
        %728 = vst [vmem:[%s309 + $0x3] sm:$0x1] %v727
        %s729 = scalar_lea.vmem %s279, 64 [#allocation9]
        %v730 = vld [vmem:[%s729] sm:$0xff]
        %v731 = vld [vmem:[%s729 + $0x8] sm:$0xff]
        %v732 = vmul.f32 %v648, %v730
        %v733 = vmul.f32 %v649, %v731
        %734 = vmatprep.subr.mxu0 0.0
        %735 = vmatpush1.msra.mxu0 %v732
        %736 = vmatprep.subr.mxu0 0.0
        %737 = vmatpush1.msra.mxu0 %v733
        %738 = vmatprep.subr.mxu0 0.0
        %739 = vmatpush1.msra.mxu0 0.0
        %740 = vmatprep.subr.mxu0 0.0
        %741 = vmatpush1.msra.mxu0 0.0
        %742 = vmatprep.subr.mxu0 0.0
        %743 = vmatpush1.msra.mxu0 0.0
        %744 = vmatprep.subr.mxu0 0.0
        %745 = vmatpush1.msra.mxu0 0.0
        %746 = vmatprep.subr.mxu0 0.0
        %747 = vmatpush1.msra.mxu0 0.0
        %748 = vmatprep.subr.mxu0 0.0
        %749 = vmatpush1.msra.mxu0 0.0
        %750 = vmatprep.subr.mxu0 0.0
        %751 = vmatpush1.msra.mxu0 0.0
        %752 = vmatprep.subr.mxu0 0.0
        %753 = vmatpush1.msra.mxu0 0.0
        %754 = vmatprep.subr.mxu0 0.0
        %755 = vmatpush1.msra.mxu0 0.0
        %756 = vmatprep.subr.mxu0 0.0
        %757 = vmatpush1.msra.mxu0 0.0
        %758 = vmatprep.subr.mxu0 0.0
        %759 = vmatpush1.msra.mxu0 0.0
        %760 = vmatprep.subr.mxu0 0.0
        %761 = vmatpush1.msra.mxu0 0.0
        %762 = vmatprep.subr.mxu0 0.0
        %763 = vmatpush1.msra.mxu0 0.0
        %764 = vmatprep.subr.mxu0 0.0
        %765 = vmatpush1.msra.mxu0 0.0
        %766 = vmatprep.subr.mxu0 0.0
        %767 = vmatpush1.msra.mxu0 0.0
        %768 = vmatprep.subr.mxu0 0.0
        %769 = vmatpush1.msra.mxu0 0.0
        %770 = vmatprep.subr.mxu0 0.0
        %771 = vmatpush1.msra.mxu0 0.0
        %772 = vmatprep.subr.mxu0 0.0
        %773 = vmatpush1.msra.mxu0 0.0
        %774 = vmatprep.subr.mxu0 0.0
        %775 = vmatpush1.msra.mxu0 0.0
        %776 = vmatprep.subr.mxu0 0.0
        %777 = vmatpush1.msra.mxu0 0.0
        %778 = vmatprep.subr.mxu0 0.0
        %779 = vmatpush1.msra.mxu0 0.0
        %780 = vmatprep.subr.mxu0 0.0
        %781 = vmatpush1.msra.mxu0 0.0
        %782 = vmatprep.subr.mxu0 0.0
        %783 = vmatpush1.msra.mxu0 0.0
        %784 = vmatprep.subr.mxu0 0.0
        %785 = vmatpush1.msra.mxu0 0.0
        %786 = vmatprep.subr.mxu0 0.0
        %787 = vmatpush1.msra.mxu0 0.0
        %788 = vmatprep.subr.mxu0 0.0
        %789 = vmatpush1.msra.mxu0 0.0
        %790 = vmatprep.subr.mxu0 0.0
        %791 = vmatpush1.msra.mxu0 0.0
        %792 = vmatprep.subr.mxu0 0.0
        %793 = vmatpush1.msra.mxu0 0.0
        %794 = vmatprep.subr.mxu0 0.0
        %795 = vmatpush1.msra.mxu0 0.0
        %796 = vmatprep.subr.mxu0 0.0
        %797 = vmatpush1.msra.mxu0 0.0
        %798 = vmatprep.mubr.f32.mxu0 0.0
        %799 = vmatmul.mubr.f32.gmra.mrb[0].mxu0 %v408
        %v800 = vpop.f32.mrb[0].mxu0
        %v801 = vadd.f32 0.0, %v800
        %v802 = vpop.f32.mrb[0].mxu0
        %803 = vdwg.mxu0
        %s804 = sld [smem:[#allocation7 + $0x4]]
        %v805 = vstv %s804
        %v806 = vmul.f32 %v805, %v801
        %807 = vst [vmem:[%s309 + $0x4] sm:$0x1] %v806
        %s808 = scalar_lea.vmem %s279, 80 [#allocation9]
        %v809 = vld [vmem:[%s808] sm:$0xff]
        %v810 = vld [vmem:[%s808 + $0x8] sm:$0xff]
        %v811 = vmul.f32 %v648, %v809
        %v812 = vmul.f32 %v649, %v810
        %813 = vmatprep.subr.mxu0 0.0
        %814 = vmatpush1.msra.mxu0 %v811
        %815 = vmatprep.subr.mxu0 0.0
        %816 = vmatpush1.msra.mxu0 %v812
        %817 = vmatprep.subr.mxu0 0.0
        %818 = vmatpush1.msra.mxu0 0.0
        %819 = vmatprep.subr.mxu0 0.0
        %820 = vmatpush1.msra.mxu0 0.0
        %821 = vmatprep.subr.mxu0 0.0
        %822 = vmatpush1.msra.mxu0 0.0
        %823 = vmatprep.subr.mxu0 0.0
        %824 = vmatpush1.msra.mxu0 0.0
        %825 = vmatprep.subr.mxu0 0.0
        %826 = vmatpush1.msra.mxu0 0.0
        %827 = vmatprep.subr.mxu0 0.0
        %828 = vmatpush1.msra.mxu0 0.0
        %829 = vmatprep.subr.mxu0 0.0
        %830 = vmatpush1.msra.mxu0 0.0
        %831 = vmatprep.subr.mxu0 0.0
        %832 = vmatpush1.msra.mxu0 0.0
        %833 = vmatprep.subr.mxu0 0.0
        %834 = vmatpush1.msra.mxu0 0.0
        %835 = vmatprep.subr.mxu0 0.0
        %836 = vmatpush1.msra.mxu0 0.0
        %837 = vmatprep.subr.mxu0 0.0
        %838 = vmatpush1.msra.mxu0 0.0
        %839 = vmatprep.subr.mxu0 0.0
        %840 = vmatpush1.msra.mxu0 0.0
        %841 = vmatprep.subr.mxu0 0.0
        %842 = vmatpush1.msra.mxu0 0.0
        %843 = vmatprep.subr.mxu0 0.0
        %844 = vmatpush1.msra.mxu0 0.0
        %845 = vmatprep.subr.mxu0 0.0
        %846 = vmatpush1.msra.mxu0 0.0
        %847 = vmatprep.subr.mxu0 0.0
        %848 = vmatpush1.msra.mxu0 0.0
        %849 = vmatprep.subr.mxu0 0.0
        %850 = vmatpush1.msra.mxu0 0.0
        %851 = vmatprep.subr.mxu0 0.0
        %852 = vmatpush1.msra.mxu0 0.0
        %853 = vmatprep.subr.mxu0 0.0
        %854 = vmatpush1.msra.mxu0 0.0
        %855 = vmatprep.subr.mxu0 0.0
        %856 = vmatpush1.msra.mxu0 0.0
        %857 = vmatprep.subr.mxu0 0.0
        %858 = vmatpush1.msra.mxu0 0.0
        %859 = vmatprep.subr.mxu0 0.0
        %860 = vmatpush1.msra.mxu0 0.0
        %861 = vmatprep.subr.mxu0 0.0
        %862 = vmatpush1.msra.mxu0 0.0
        %863 = vmatprep.subr.mxu0 0.0
        %864 = vmatpush1.msra.mxu0 0.0
        %865 = vmatprep.subr.mxu0 0.0
        %866 = vmatpush1.msra.mxu0 0.0
        %867 = vmatprep.subr.mxu0 0.0
        %868 = vmatpush1.msra.mxu0 0.0
        %869 = vmatprep.subr.mxu0 0.0
        %870 = vmatpush1.msra.mxu0 0.0
        %871 = vmatprep.subr.mxu0 0.0
        %872 = vmatpush1.msra.mxu0 0.0
        %873 = vmatprep.subr.mxu0 0.0
        %874 = vmatpush1.msra.mxu0 0.0
        %875 = vmatprep.subr.mxu0 0.0
        %876 = vmatpush1.msra.mxu0 0.0
        %877 = vmatprep.mubr.f32.mxu0 0.0
        %878 = vmatmul.mubr.f32.gmra.mrb[0].mxu0 %v408
        %v879 = vpop.f32.mrb[0].mxu0
        %v880 = vadd.f32 0.0, %v879
        %v881 = vpop.f32.mrb[0].mxu0
        %882 = vdwg.mxu0
        %s883 = sld [smem:[#allocation7 + $0x5]]
        %v884 = vstv %s883
        %v885 = vmul.f32 %v884, %v880
        %886 = vst [vmem:[%s309 + $0x5] sm:$0x1] %v885
        %v887 = vld [vmem:[%s341] sm:$0xff]
        %v888 = vld [vmem:[%s341 + $0x8] sm:$0xff]
        %v889 = vmul.f32 %v398, %v887
        %v890 = vmul.f32 %v399, %v888
        %s891 = scalar_lea.vmem %s279, 96 [#allocation9]
        %v892 = vld [vmem:[%s891] sm:$0xff]
        %v893 = vld [vmem:[%s891 + $0x8] sm:$0xff]
        %v894 = vmul.f32 %v889, %v892
        %v895 = vmul.f32 %v890, %v893
        %896 = vmatprep.subr.mxu0 0.0
        %897 = vmatpush1.msra.mxu0 %v894
        %898 = vmatprep.subr.mxu0 0.0
        %899 = vmatpush1.msra.mxu0 %v895
        %900 = vmatprep.subr.mxu0 0.0
        %901 = vmatpush1.msra.mxu0 0.0
        %902 = vmatprep.subr.mxu0 0.0
        %903 = vmatpush1.msra.mxu0 0.0
        %904 = vmatprep.subr.mxu0 0.0
        %905 = vmatpush1.msra.mxu0 0.0
        %906 = vmatprep.subr.mxu0 0.0
        %907 = vmatpush1.msra.mxu0 0.0
        %908 = vmatprep.subr.mxu0 0.0
        %909 = vmatpush1.msra.mxu0 0.0
        %910 = vmatprep.subr.mxu0 0.0
        %911 = vmatpush1.msra.mxu0 0.0
        %912 = vmatprep.subr.mxu0 0.0
        %913 = vmatpush1.msra.mxu0 0.0
        %914 = vmatprep.subr.mxu0 0.0
        %915 = vmatpush1.msra.mxu0 0.0
        %916 = vmatprep.subr.mxu0 0.0
        %917 = vmatpush1.msra.mxu0 0.0
        %918 = vmatprep.subr.mxu0 0.0
        %919 = vmatpush1.msra.mxu0 0.0
        %920 = vmatprep.subr.mxu0 0.0
        %921 = vmatpush1.msra.mxu0 0.0
        %922 = vmatprep.subr.mxu0 0.0
        %923 = vmatpush1.msra.mxu0 0.0
        %924 = vmatprep.subr.mxu0 0.0
        %925 = vmatpush1.msra.mxu0 0.0
        %926 = vmatprep.subr.mxu0 0.0
        %927 = vmatpush1.msra.mxu0 0.0
        %928 = vmatprep.subr.mxu0 0.0
        %929 = vmatpush1.msra.mxu0 0.0
        %930 = vmatprep.subr.mxu0 0.0
        %931 = vmatpush1.msra.mxu0 0.0
        %932 = vmatprep.subr.mxu0 0.0
        %933 = vmatpush1.msra.mxu0 0.0
        %934 = vmatprep.subr.mxu0 0.0
        %935 = vmatpush1.msra.mxu0 0.0
        %936 = vmatprep.subr.mxu0 0.0
        %937 = vmatpush1.msra.mxu0 0.0
        %938 = vmatprep.subr.mxu0 0.0
        %939 = vmatpush1.msra.mxu0 0.0
        %940 = vmatprep.subr.mxu0 0.0
        %941 = vmatpush1.msra.mxu0 0.0
        %942 = vmatprep.subr.mxu0 0.0
        %943 = vmatpush1.msra.mxu0 0.0
        %944 = vmatprep.subr.mxu0 0.0
        %945 = vmatpush1.msra.mxu0 0.0
        %946 = vmatprep.subr.mxu0 0.0
        %947 = vmatpush1.msra.mxu0 0.0
        %948 = vmatprep.subr.mxu0 0.0
        %949 = vmatpush1.msra.mxu0 0.0
        %950 = vmatprep.subr.mxu0 0.0
        %951 = vmatpush1.msra.mxu0 0.0
        %952 = vmatprep.subr.mxu0 0.0
        %953 = vmatpush1.msra.mxu0 0.0
        %954 = vmatprep.subr.mxu0 0.0
        %955 = vmatpush1.msra.mxu0 0.0
        %956 = vmatprep.subr.mxu0 0.0
        %957 = vmatpush1.msra.mxu0 0.0
        %958 = vmatprep.subr.mxu0 0.0
        %959 = vmatpush1.msra.mxu0 0.0
        %960 = vmatprep.mubr.f32.mxu0 0.0
        %961 = vmatmul.mubr.f32.gmra.mrb[0].mxu0 %v408
        %v962 = vpop.f32.mrb[0].mxu0
        %v963 = vadd.f32 0.0, %v962
        %v964 = vpop.f32.mrb[0].mxu0
        %965 = vdwg.mxu0
        %s966 = sld [smem:[#allocation7 + $0x6]]
        %v967 = vstv %s966
        %v968 = vmul.f32 %v967, %v963
        %969 = vst [vmem:[%s309 + $0x6] sm:$0x1] %v968
        %s970 = scalar_lea.vmem %s279, 112 [#allocation9]
        %v971 = vld [vmem:[%s970] sm:$0xff]
        %v972 = vld [vmem:[%s970 + $0x8] sm:$0xff]
        %v973 = vmul.f32 %v889, %v971
        %v974 = vmul.f32 %v890, %v972
        %975 = vmatprep.subr.mxu0 0.0
        %976 = vmatpush1.msra.mxu0 %v973
        %977 = vmatprep.subr.mxu0 0.0
        %978 = vmatpush1.msra.mxu0 %v974
        %979 = vmatprep.subr.mxu0 0.0
        %980 = vmatpush1.msra.mxu0 0.0
        %981 = vmatprep.subr.mxu0 0.0
        %982 = vmatpush1.msra.mxu0 0.0
        %983 = vmatprep.subr.mxu0 0.0
        %984 = vmatpush1.msra.mxu0 0.0
        %985 = vmatprep.subr.mxu0 0.0
        %986 = vmatpush1.msra.mxu0 0.0
        %987 = vmatprep.subr.mxu0 0.0
        %988 = vmatpush1.msra.mxu0 0.0
        %989 = vmatprep.subr.mxu0 0.0
        %990 = vmatpush1.msra.mxu0 0.0
        %991 = vmatprep.subr.mxu0 0.0
        %992 = vmatpush1.msra.mxu0 0.0
        %993 = vmatprep.subr.mxu0 0.0
        %994 = vmatpush1.msra.mxu0 0.0
        %995 = vmatprep.subr.mxu0 0.0
        %996 = vmatpush1.msra.mxu0 0.0
        %997 = vmatprep.subr.mxu0 0.0
        %998 = vmatpush1.msra.mxu0 0.0
        %999 = vmatprep.subr.mxu0 0.0
        %1000 = vmatpush1.msra.mxu0 0.0
        %1001 = vmatprep.subr.mxu0 0.0
        %1002 = vmatpush1.msra.mxu0 0.0
        %1003 = vmatprep.subr.mxu0 0.0
        %1004 = vmatpush1.msra.mxu0 0.0
        %1005 = vmatprep.subr.mxu0 0.0
        %1006 = vmatpush1.msra.mxu0 0.0
        %1007 = vmatprep.subr.mxu0 0.0
        %1008 = vmatpush1.msra.mxu0 0.0
        %1009 = vmatprep.subr.mxu0 0.0
        %1010 = vmatpush1.msra.mxu0 0.0
        %1011 = vmatprep.subr.mxu0 0.0
        %1012 = vmatpush1.msra.mxu0 0.0
        %1013 = vmatprep.subr.mxu0 0.0
        %1014 = vmatpush1.msra.mxu0 0.0
        %1015 = vmatprep.subr.mxu0 0.0
        %1016 = vmatpush1.msra.mxu0 0.0
        %1017 = vmatprep.subr.mxu0 0.0
        %1018 = vmatpush1.msra.mxu0 0.0
        %1019 = vmatprep.subr.mxu0 0.0
        %1020 = vmatpush1.msra.mxu0 0.0
        %1021 = vmatprep.subr.mxu0 0.0
        %1022 = vmatpush1.msra.mxu0 0.0
        %1023 = vmatprep.subr.mxu0 0.0
        %1024 = vmatpush1.msra.mxu0 0.0
        %1025 = vmatprep.subr.mxu0 0.0
        %1026 = vmatpush1.msra.mxu0 0.0
        %1027 = vmatprep.subr.mxu0 0.0
        %1028 = vmatpush1.msra.mxu0 0.0
        %1029 = vmatprep.subr.mxu0 0.0
        %1030 = vmatpush1.msra.mxu0 0.0
        %1031 = vmatprep.subr.mxu0 0.0
        %1032 = vmatpush1.msra.mxu0 0.0
        %1033 = vmatprep.subr.mxu0 0.0
        %1034 = vmatpush1.msra.mxu0 0.0
        %1035 = vmatprep.subr.mxu0 0.0
        %1036 = vmatpush1.msra.mxu0 0.0
        %1037 = vmatprep.subr.mxu0 0.0
        %1038 = vmatpush1.msra.mxu0 0.0
        %1039 = vmatprep.mubr.f32.mxu0 0.0
        %1040 = vmatmul.mubr.f32.gmra.mrb[0].mxu0 %v408
        %v1041 = vpop.f32.mrb[0].mxu0
        %v1042 = vadd.f32 0.0, %v1041
        %v1043 = vpop.f32.mrb[0].mxu0
        %1044 = vdwg.mxu0
        %s1045 = sld [smem:[#allocation7 + $0x7]]
        %v1046 = vstv %s1045
        %v1047 = vmul.f32 %v1046, %v1042
        %1048 = vst [vmem:[%s309 + $0x7] sm:$0x1] %v1047
        %v1049 = vsub.f32 0.0, %v383
        %v1050 = vmul.f32 %v1049, 1.442695
        %v1051 = vpow.pop %v1050
        %v1052 = vmul.f32 %v1051, 100000.0
        %1053 = vst [vmem:[%s315 - $0x7] sm:$0x80] %v1052
        %s1054 = sand.u32 %s133, 1
        %s1055 = scalar_lea.sflag [#allocation4], %s1054
        %s1056 = sand.u32 %s133, 1
        %s1057 = smul.addr %s1056, 8
        %s1058 = scalar_lea.vmem [#allocation11], %s1057
        %s1059 = sand.u32 %s159, 1
        %s1060 = scalar_lea.sflag [#allocation13], %s1059
        %s1061 = sand.u32 %s159, 1
        %s1062 = scalar_lea.vmem [#allocation12], %s1061
        // Predicated region
        $region53: #{tpu_custom_call.1} parent=35 // pred_check
          %p1063 = pneg %p143
        $region54: #{tpu_custom_call.1} parent=35 // pred_check_branch
          %1065 = sbr.rel (%p1063) target = $region56
        $region55: #{tpu_custom_call.1} parent=35 // pred_region
          %s1067 = ssub.s32 128, 128
          %1068 = vsyncadd %s1055, %s1067
          %s1069 = smul.addr %s31, 128
          %s1070 = scalar_lea.hbm %s4, %s1069
          %s1072 = sshll.u32 %s1058, 4
          %s1073 = int_to_ptr.vmem [resolvable:$true] %s1072
          %1075 = dma.vmem_to_hbm [thread:$0]  %s1073, 128, %s1070, %s1055
        $region56: #{tpu_custom_call.1} parent=35 // pred_fallthru
          _
        // Predicated region
        $region57: #{tpu_custom_call.1} parent=35 // pred_check
          %p1076 = pneg %p169
        $region58: #{tpu_custom_call.1} parent=35 // pred_check_branch
          %1078 = sbr.rel (%p1076) target = $region60
        $region59: #{tpu_custom_call.1} parent=35 // pred_region
          %s1080 = ssub.s32 16, 16
          %1081 = vsyncadd %s1060, %s1080
          %s1082 = smul.addr %s31, 16
          %s1083 = scalar_lea.hbm %s5, %s1082
          %s1085 = sshll.u32 %s1062, 4
          %s1086 = int_to_ptr.vmem [resolvable:$true] %s1085
          %1088 = dma.vmem_to_hbm [thread:$0]  %s1086, 16, %s1083, %s1060
        $region60: #{tpu_custom_call.1} parent=35 // pred_fallthru
          _
      $region36: #{tpu_custom_call.1} parent=5 // pred_fallthru
        _
      %p1089 = scmp.le.s32.totalorder 2, %s26
      // Predicated region
      $region61: #{tpu_custom_call.1} parent=5 // pred_check
        %p1090 = pneg %p1089
      $region62: #{tpu_custom_call.1} parent=5 // pred_check_branch
        %1092 = sbr.rel (%p1090) target = $region64
      $region63: #{tpu_custom_call.1} parent=5 // pred_region
        %s1093 = ssub.s32 %s26, 2
        // Predicated region
        $region65: #{tpu_custom_call.1} parent=63 // pred_check
          %p1094 = pneg %p149
        $region66: #{tpu_custom_call.1} parent=63 // pred_check_branch
          %1096 = sbr.rel (%p1094) target = $region68
        $region67: #{tpu_custom_call.1} parent=63 // pred_region
          %s1097 = sand.u32 %s134, 1
          %s1098 = scalar_lea.sflag [#allocation4], %s1097
          %s1099 = sand.u32 %s134, 1
          %s1100 = smul.addr %s1099, 8
          %s1101 = scalar_lea.vmem [#allocation11], %s1100
          %1102 = dma.done %s1098, 128
        $region68: #{tpu_custom_call.1} parent=63 // pred_fallthru
          _
        // Predicated region
        $region69: #{tpu_custom_call.1} parent=63 // pred_check
          %p1103 = pneg %p175
        $region70: #{tpu_custom_call.1} parent=63 // pred_check_branch
          %1105 = sbr.rel (%p1103) target = $region72
        $region71: #{tpu_custom_call.1} parent=63 // pred_region
          %s1106 = sand.u32 %s160, 1
          %s1107 = scalar_lea.sflag [#allocation13], %s1106
          %s1108 = sand.u32 %s160, 1
          %s1109 = scalar_lea.vmem [#allocation12], %s1108
          %1110 = dma.done %s1107, 16
        $region72: #{tpu_custom_call.1} parent=63 // pred_fallthru
          _
      $region64: #{tpu_custom_call.1} parent=5 // pred_fallthru
        _
    $region6: #{tpu_custom_call.1} parent=1 // loop_footer
      %s30 = sadd.s32 1, %s26
    $region7: #{tpu_custom_call.1} parent=1 // loop_footer_branch
      %25 = sbr.rel target = $region3
    $region8: #{tpu_custom_call.1} parent=1 // loop_exit
      _
    %1111 = vsyncpa [#allocation3], 1
    %s1112 = scalar_lea.sflag [#allocation3], 1
    %1113 = vsyncpa %s1112, 1
    %1114 = vsyncpa [#allocation10], 1
    %s1115 = scalar_lea.sflag [#allocation10], 1
    %1116 = vsyncpa %s1115, 1
    %1117 = vsyncpa [#allocation4], 1
    %s1118 = scalar_lea.sflag [#allocation4], 1
    %1119 = vsyncpa %s1118, 1
    %1120 = vsyncpa [#allocation13], 1
    %s1121 = scalar_lea.sflag [#allocation13], 1
    %1122 = vsyncpa %s1121, 1
    %1123 = vsyncpa [#allocation5], 1
    %s1124 = scalar_lea.sflag [#allocation5], 1
    %1125 = vsyncpa %s1124, 1
    %1126 = vsyncpa [#allocation6], 1
    %s1127 = scalar_lea.sflag [#allocation6], 1
    %1128 = vsyncpa %s1127, 1

</llo_original>
